<compile_context>
chip_gen: v7x
topology: tpu7x:2x2x1
jax: 0.10.0
libtpu: 0.0.40
codegen_flags: <defaults>
</compile_context>

<pallas_src>
import numpy as np
from functools import partial

import jax
import jax.numpy as jnp
from jax.experimental import pallas as pl
from jax.experimental.pallas import tpu as pltpu

LRELU_SLOPE = 0.2
BN_EPS = 1e-5
KSIZE = 4  # DCGAN conv kernel size


def _leaky(x):
    return jnp.where(x > 0, x, LRELU_SLOPE * x)


# ---------------------------------------------------------------------------
# Fused forward kernel: L0 conv+bias+LReLU -> in-kernel patch gather ->
# L1 conv+BN+LReLU -> disc conv+LReLU.  Everything stays in VMEM / vregs.
# ---------------------------------------------------------------------------
def fused_dcgan_disc_kernel(p0t_ref, w0t_ref, b0_ref, sel_ref, w1t_ref, wd_ref,
                            out_ref, feat_ref, p1t_ref):
    N = out_ref.shape[1]              # batch
    C0 = w0t_ref.shape[0]             # step_channels (L0 output channels)
    n_off = sel_ref.shape[0]          # k*k = 16 kernel offsets

    # ---- L0: conv(Cin->C0, k4 s2 p1) + bias + LeakyReLU (transposed layout) ----
    # y0t[c, m0],  m0 = n*64 + h*8 + w   (M0 = N*8*8 = 128 on the lane axis)
    y0t = jnp.dot(w0t_ref[...], p0t_ref[...],
                  preferred_element_type=jnp.float32)         # (C0, M0) f32
    y0t = _leaky(y0t + b0_ref[...])                           # bias (C0,1) lane-bcast

    # ---- In-kernel im2col for L1 via constant 0/1 gather matmuls ----
    # p1t[(kh,kw,cin), m1],  m1 = (ho*4+wo)*N + n.  Padding positions have all-zero
    # gather columns, so they come out as exact zeros.
    for i in range(n_off):
        blk = jnp.dot(y0t, sel_ref[i],
                      preferred_element_type=jnp.float32)     # (C0, M1)
        p1t_ref[i * C0:(i + 1) * C0, :] = blk

    # ---- L1: conv(C0->2*C0, k4 s2 p1, no bias) + BatchNorm + LeakyReLU ----
    y1t = jnp.dot(w1t_ref[...], p1t_ref[...],
                  preferred_element_type=jnp.float32)         # (2*C0, M1) f32
    # training-mode BN (gamma=1, beta=0, biased variance), one pass over y1t
    mean = jnp.mean(y1t, axis=1, keepdims=True)
    meansq = jnp.mean(y1t * y1t, axis=1, keepdims=True)
    var = jnp.maximum(meansq - mean * mean, 0.0)
    y1t = _leaky((y1t - mean) * jax.lax.rsqrt(var + BN_EPS))
    feat_ref[...] = y1t                                       # feature_matching output

    # ---- Disc: conv(2*C0 -> 1, k4 s1 p0, no bias) + LeakyReLU ----
    # Cout=1: VPU multiply + sublane reduce instead of an MXU matmul.
    wd = wd_ref[...]                                          # (2*C0, 16) f32
    acc = jnp.zeros((1, N), jnp.float32)
    for j in range(wd.shape[1]):                              # 16 spatial positions
        acc = acc + jnp.sum(y1t[:, j * N:(j + 1) * N] * wd[:, j:j + 1],
                            axis=0, keepdims=True)
    out_ref[...] = _leaky(acc)


# ---------------------------------------------------------------------------
# Host-side helpers: layer-0 im2col (XLA, on the raw input only), gather matrix,
# parameter init.
# ---------------------------------------------------------------------------
def im2col_nhwc(x_nhwc, k, s, p):
    """(N,H,W,C) -> (N*Ho*Wo, k*k*C); rows (n,ho,wo), cols (kh,kw,cin)."""
    N, H, W, C = x_nhwc.shape
    xp = jnp.pad(x_nhwc, ((0, 0), (p, p), (p, p), (0, 0)))
    Ho = (H + 2 * p - k) // s + 1
    Wo = (W + 2 * p - k) // s + 1
    cols = []
    for kh in range(k):
        for kw in range(k):
            cols.append(xp[:, kh:kh + s * Ho:s, kw:kw + s * Wo:s, :])
    patches = jnp.concatenate(cols, axis=-1)
    return patches.reshape(N * Ho * Wo, k * k * C), (N, Ho, Wo)


def build_l1_gather(N, H0, Ho, k=KSIZE, stride=2, pad=1):
    """0/1 gather matrices turning the transposed L0 activation into L1 im2col patches.

    Shape (k*k, N*H0*H0, N*Ho*Ho).  Source columns m0 = n*H0*H0 + h*H0 + w,
    target columns m1 = (ho*Ho + wo)*N + n.  Out-of-range (padding) positions get
    all-zero columns, which implements zero padding exactly.
    """
    W0, Wo = H0, Ho
    M0, M1 = N * H0 * W0, N * Ho * Wo
    S = np.zeros((k * k, M0, M1), dtype=np.float32)
    for kh in range(k):
        for kw in range(k):
            i = kh * k + kw
            for ho in range(Ho):
                for wo in range(Wo):
                    h = stride * ho + kh - pad
                    w = stride * wo + kw - pad
                    if 0 <= h < H0 and 0 <= w < W0:
                        for n in range(N):
                            S[i, n * H0 * W0 + h * W0 + w, (ho * Wo + wo) * N + n] = 1.0
    return S


def kaiming_normal(key, fan_in, shape):
    # PyTorch nn.init.kaiming_normal_ default: fan_in mode, gain sqrt(2)
    return jax.random.normal(key, shape, dtype=jnp.float32) * (2.0 / fan_in) ** 0.5


def init_params(key, in_channels=4, step_channels=8, in_size=16):
    assert in_size == 16, "fused kernel is specialized to in_size=16 (one middle layer)"
    # TODO(synk): generalize to in_size > 16 by chaining one gather-matrix + conv+BN
    # stage per extra middle layer inside the fused kernel.
    d = step_channels
    k0, k1, k2, k3 = jax.random.split(key, 4)
    return {
        # L0 conv weight as (k*k*Cin, d) matrix, rows ordered (kh, kw, cin)
        "w0": kaiming_normal(k0, in_channels * KSIZE * KSIZE,
                             (KSIZE * KSIZE * in_channels, d)),
        # PyTorch Conv2d default bias init: U(-1/sqrt(fan_in), 1/sqrt(fan_in))
        "b0": (jax.random.uniform(k1, (d,), dtype=jnp.float32) * 2 - 1)
              / (in_channels * KSIZE * KSIZE) ** 0.5,
        # L1 conv weight (k*k*d, 2d), rows ordered (kh, kw, cin); no bias (BN follows)
        "w1": kaiming_normal(k2, d * KSIZE * KSIZE, (KSIZE * KSIZE * d, 2 * d)),
        # disc conv weight stored as (2d, k*k) = (cin, kh*4+kw); no bias
        "w_disc": kaiming_normal(k3, 2 * d * KSIZE * KSIZE, (2 * d, KSIZE * KSIZE)),
    }


# ---------------------------------------------------------------------------
# Forward pass
# ---------------------------------------------------------------------------
def dcgan_discriminator_forward(params, x_nchw, feature_matching=False):
    """x_nchw: (N, Cin, 16, 16) float32 -> (N,) logits (or NCHW features)."""
    N, Cin, H, W = x_nchw.shape
    C0 = params["w0"].shape[1]
    C1 = params["w1"].shape[1]
    H0, H1 = H // 2, H // 4                                    # 8, 4
    M1 = N * H1 * H1

    # Layer-0 im2col on the raw input (folds the NCHW->NHWC relayout into it);
    # everything downstream runs inside the single fused Pallas kernel.
    x_nhwc = jnp.transpose(x_nchw, (0, 2, 3, 1))
    patches0, _ = im2col_nhwc(x_nhwc, KSIZE, 2, 1)             # (N*64, 16*Cin)

    # Transposed ("M on lanes") f32 operands (f32 x f32 = f32 dots lower everywhere;
    # bf16 x bf16 -> f32 is what broke the previous version).
    p0t = patches0.T.astype(jnp.float32)                       # (16*Cin, N*64)
    w0t = params["w0"].T.astype(jnp.float32)                   # (C0, 16*Cin)
    b0c = params["b0"].reshape(-1, 1).astype(jnp.float32)      # (C0, 1)
    sel = jnp.asarray(build_l1_gather(N, H0, H1), dtype=jnp.float32)  # (16, N*64, M1)
    w1t = params["w1"].T.astype(jnp.float32)                   # (C1, 16*C0)
    wd = params["w_disc"].astype(jnp.float32)                  # (C1, 16)

    vmem = pl.BlockSpec(memory_space=pltpu.MemorySpace.VMEM)
    out, featt = pl.pallas_call(
        fused_dcgan_disc_kernel,
        out_shape=(jax.ShapeDtypeStruct((1, N), jnp.float32),   # logits (lane axis = N)
                   jax.ShapeDtypeStruct((C1, M1), jnp.float32)),  # L1 features
        in_specs=[vmem] * 6,
        out_specs=(vmem, vmem),
        scratch_shapes=[pltpu.VMEM((KSIZE * KSIZE * C0, M1), jnp.float32)],
    )(p0t, w0t, b0c, sel, w1t, wd)

    if feature_matching:
        # featt[c, (ho*H1+wo)*N + n] -> (N, C1, H1, W1) NCHW, like PyTorch
        return featt.reshape(C1, H1, H1, N).transpose(3, 0, 1, 2)
    return out[0]                                              # (N,)


# ---------------------------------------------------------------------------
# Pure-JAX f32 reference (same weight-matrix convention) for a numerical check.
# ---------------------------------------------------------------------------
def reference_forward(params, x_nchw):
    x = jnp.transpose(x_nchw, (0, 2, 3, 1))
    N = x.shape[0]
    # L0
    p0, (_, Ho, Wo) = im2col_nhwc(x, KSIZE, 2, 1)
    y0 = _leaky(p0 @ params["w0"] + params["b0"][None, :]).reshape(N, Ho, Wo, -1)
    # L1 + BN (batch stats, gamma=1, beta=0) + LReLU
    p1, (_, Ho, Wo) = im2col_nhwc(y0, KSIZE, 2, 1)
    y1 = (p1 @ params["w1"]).reshape(N, Ho, Wo, -1)
    mean = y1.mean(axis=(0, 1, 2), keepdims=True)
    var = ((y1 - mean) ** 2).mean(axis=(0, 1, 2), keepdims=True)
    y1 = _leaky((y1 - mean) * jax.lax.rsqrt(var + BN_EPS))
    # disc: full 4x4 window, stride 1, no pad -> (N,)
    y1f = y1.reshape(N, Ho * Wo, -1)                           # [n, j, c]
    logits = jnp.einsum("njc,cj->n", y1f, params["w_disc"])
    return _leaky(logits)


if __name__ == "__main__":
    key = jax.random.PRNGKey(0)
    k_param, k_x = jax.random.split(key)

    IN_SIZE, IN_CH, STEP_CH, BATCH = 16, 4, 8, 2
    params = init_params(k_param, in_channels=IN_CH, step_channels=STEP_CH,
                         in_size=IN_SIZE)
    x = jax.random.normal(k_x, (BATCH, IN_CH, IN_SIZE, IN_SIZE), dtype=jnp.float32)

    fwd = jax.jit(partial(dcgan_discriminator_forward, feature_matching=False))
    out = jax.block_until_ready(fwd(params, x))

    assert out.shape == (BATCH,), f"unexpected output shape {out.shape}"
    assert out.dtype == jnp.float32
    assert bool(jnp.all(jnp.isfinite(out)))

    # Numerical check against the pure-JAX f32 reference.
    ref = jax.block_until_ready(reference_forward(params, x))
    assert bool(jnp.allclose(out, ref, rtol=5e-2, atol=5e-2)), (out, ref)

    print("KERNEL_OK")
</pallas_src>

<mosaic_0001>
module attributes {stable_mosaic.version = 11 : i64} {
  func.func @fused_dcgan_disc_kernel(%arg0: memref<64x128xf32, #tpu.memory_space<vmem>>, %arg1: memref<8x64xf32, #tpu.memory_space<vmem>>, %arg2: memref<8x1xf32, #tpu.memory_space<vmem>>, %arg3: memref<16x128x32xf32, #tpu.memory_space<vmem>>, %arg4: memref<16x128xf32, #tpu.memory_space<vmem>>, %arg5: memref<16x16xf32, #tpu.memory_space<vmem>>, %arg6: memref<1x2xf32, #tpu.memory_space<vmem>>, %arg7: memref<16x32xf32, #tpu.memory_space<vmem>>, %arg8: memref<128x32xf32, #tpu.memory_space<vmem>>) attributes {dimension_semantics = [], scalar_prefetch = 0 : i64, scratch_operands = 1 : i64, tpu.core_type = #tpu.core_type<tc>} {
    %c0 = arith.constant 0 : index
    %c0_0 = arith.constant 0 : index
    %0 = vector.load %arg1[%c0, %c0_0] : memref<8x64xf32, #tpu.memory_space<vmem>>, vector<8x64xf32>
    %c0_1 = arith.constant 0 : index
    %c0_2 = arith.constant 0 : index
    %1 = vector.load %arg0[%c0_1, %c0_2] : memref<64x128xf32, #tpu.memory_space<vmem>>, vector<64x128xf32>
    %cst = arith.constant dense<0.000000e+00> : vector<8x128xf32>
    %2 = tpu.matmul %0, %1, %cst {dimension_numbers = #tpu.dot_dimension_numbers<[1], [0], [0], [1], [0, 0, 1, 1], [], []>} : vector<8x64xf32>, vector<64x128xf32>, vector<8x128xf32> -> vector<8x128xf32>
    %c0_3 = arith.constant 0 : index
    %c0_4 = arith.constant 0 : index
    %3 = vector.load %arg2[%c0_3, %c0_4] : memref<8x1xf32, #tpu.memory_space<vmem>>, vector<8x1xf32>
    %4 = vector.broadcast %3 : vector<8x1xf32> to vector<8x128xf32>
    %5 = arith.addf %2, %4 : vector<8x128xf32>
    %cst_5 = arith.constant 0.000000e+00 : f32
    %6 = vector.broadcast %cst_5 : f32 to vector<8x128xf32>
    %7 = arith.cmpf ogt, %5, %6 : vector<8x128xf32>
    %cst_6 = arith.constant 2.000000e-01 : f32
    %8 = vector.broadcast %cst_6 : f32 to vector<8x128xf32>
    %9 = arith.mulf %8, %5 : vector<8x128xf32>
    %10 = arith.select %7, %5, %9 : vector<8x128xi1>, vector<8x128xf32>
    %c0_7 = arith.constant 0 : index
    %c0_8 = arith.constant 0 : index
    %c0_9 = arith.constant 0 : index
    %11 = vector.load %arg3[%c0_7, %c0_8, %c0_9] : memref<16x128x32xf32, #tpu.memory_space<vmem>>, vector<1x128x32xf32>
    %12 = vector.shape_cast %11 : vector<1x128x32xf32> to vector<128x32xf32>
    %cst_10 = arith.constant dense<0.000000e+00> : vector<8x32xf32>
    %13 = tpu.matmul %10, %12, %cst_10 {dimension_numbers = #tpu.dot_dimension_numbers<[1], [0], [0], [1], [0, 0, 1, 1], [], []>} : vector<8x128xf32>, vector<128x32xf32>, vector<8x32xf32> -> vector<8x32xf32>
    %c0_11 = arith.constant 0 : index
    %c0_12 = arith.constant 0 : index
    %14 = vector.load %arg8[%c0_11, %c0_12] : memref<128x32xf32, #tpu.memory_space<vmem>>, vector<8x32xf32>
    tpu.vector_store %arg8[%c0_11, %c0_12], %13 {strides = array<i32>} : memref<128x32xf32, #tpu.memory_space<vmem>>, vector<8x32xf32>,
    %c1 = arith.constant 1 : index
    %c0_13 = arith.constant 0 : index
    %c0_14 = arith.constant 0 : index
    %15 = vector.load %arg3[%c1, %c0_13, %c0_14] : memref<16x128x32xf32, #tpu.memory_space<vmem>>, vector<1x128x32xf32>
    %16 = vector.shape_cast %15 : vector<1x128x32xf32> to vector<128x32xf32>
    %cst_15 = arith.constant dense<0.000000e+00> : vector<8x32xf32>
    %17 = tpu.matmul %10, %16, %cst_15 {dimension_numbers = #tpu.dot_dimension_numbers<[1], [0], [0], [1], [0, 0, 1, 1], [], []>} : vector<8x128xf32>, vector<128x32xf32>, vector<8x32xf32> -> vector<8x32xf32>
    %c8 = arith.constant 8 : index
    %c0_16 = arith.constant 0 : index
    %18 = vector.load %arg8[%c8, %c0_16] : memref<128x32xf32, #tpu.memory_space<vmem>>, vector<8x32xf32>
    tpu.vector_store %arg8[%c8, %c0_16], %17 {strides = array<i32>} : memref<128x32xf32, #tpu.memory_space<vmem>>, vector<8x32xf32>,
    %c2 = arith.constant 2 : index
    %c0_17 = arith.constant 0 : index
    %c0_18 = arith.constant 0 : index
    %19 = vector.load %arg3[%c2, %c0_17, %c0_18] : memref<16x128x32xf32, #tpu.memory_space<vmem>>, vector<1x128x32xf32>
    %20 = vector.shape_cast %19 : vector<1x128x32xf32> to vector<128x32xf32>
    %cst_19 = arith.constant dense<0.000000e+00> : vector<8x32xf32>
    %21 = tpu.matmul %10, %20, %cst_19 {dimension_numbers = #tpu.dot_dimension_numbers<[1], [0], [0], [1], [0, 0, 1, 1], [], []>} : vector<8x128xf32>, vector<128x32xf32>, vector<8x32xf32> -> vector<8x32xf32>
    %c16 = arith.constant 16 : index
    %c0_20 = arith.constant 0 : index
    %22 = vector.load %arg8[%c16, %c0_20] : memref<128x32xf32, #tpu.memory_space<vmem>>, vector<8x32xf32>
    tpu.vector_store %arg8[%c16, %c0_20], %21 {strides = array<i32>} : memref<128x32xf32, #tpu.memory_space<vmem>>, vector<8x32xf32>,
    %c3 = arith.constant 3 : index
    %c0_21 = arith.constant 0 : index
    %c0_22 = arith.constant 0 : index
    %23 = vector.load %arg3[%c3, %c0_21, %c0_22] : memref<16x128x32xf32, #tpu.memory_space<vmem>>, vector<1x128x32xf32>
    %24 = vector.shape_cast %23 : vector<1x128x32xf32> to vector<128x32xf32>
    %cst_23 = arith.constant dense<0.000000e+00> : vector<8x32xf32>
    %25 = tpu.matmul %10, %24, %cst_23 {dimension_numbers = #tpu.dot_dimension_numbers<[1], [0], [0], [1], [0, 0, 1, 1], [], []>} : vector<8x128xf32>, vector<128x32xf32>, vector<8x32xf32> -> vector<8x32xf32>
    %c24 = arith.constant 24 : index
    %c0_24 = arith.constant 0 : index
    %26 = vector.load %arg8[%c24, %c0_24] : memref<128x32xf32, #tpu.memory_space<vmem>>, vector<8x32xf32>
    tpu.vector_store %arg8[%c24, %c0_24], %25 {strides = array<i32>} : memref<128x32xf32, #tpu.memory_space<vmem>>, vector<8x32xf32>,
    %c4 = arith.constant 4 : index
    %c0_25 = arith.constant 0 : index
    %c0_26 = arith.constant 0 : index
    %27 = vector.load %arg3[%c4, %c0_25, %c0_26] : memref<16x128x32xf32, #tpu.memory_space<vmem>>, vector<1x128x32xf32>
    %28 = vector.shape_cast %27 : vector<1x128x32xf32> to vector<128x32xf32>
    %cst_27 = arith.constant dense<0.000000e+00> : vector<8x32xf32>
    %29 = tpu.matmul %10, %28, %cst_27 {dimension_numbers = #tpu.dot_dimension_numbers<[1], [0], [0], [1], [0, 0, 1, 1], [], []>} : vector<8x128xf32>, vector<128x32xf32>, vector<8x32xf32> -> vector<8x32xf32>
    %c32 = arith.constant 32 : index
    %c0_28 = arith.constant 0 : index
    %30 = vector.load %arg8[%c32, %c0_28] : memref<128x32xf32, #tpu.memory_space<vmem>>, vector<8x32xf32>
    tpu.vector_store %arg8[%c32, %c0_28], %29 {strides = array<i32>} : memref<128x32xf32, #tpu.memory_space<vmem>>, vector<8x32xf32>,
    %c5 = arith.constant 5 : index
    %c0_29 = arith.constant 0 : index
    %c0_30 = arith.constant 0 : index
    %31 = vector.load %arg3[%c5, %c0_29, %c0_30] : memref<16x128x32xf32, #tpu.memory_space<vmem>>, vector<1x128x32xf32>
    %32 = vector.shape_cast %31 : vector<1x128x32xf32> to vector<128x32xf32>
    %cst_31 = arith.constant dense<0.000000e+00> : vector<8x32xf32>
    %33 = tpu.matmul %10, %32, %cst_31 {dimension_numbers = #tpu.dot_dimension_numbers<[1], [0], [0], [1], [0, 0, 1, 1], [], []>} : vector<8x128xf32>, vector<128x32xf32>, vector<8x32xf32> -> vector<8x32xf32>
    %c40 = arith.constant 40 : index
    %c0_32 = arith.constant 0 : index
    %34 = vector.load %arg8[%c40, %c0_32] : memref<128x32xf32, #tpu.memory_space<vmem>>, vector<8x32xf32>
    tpu.vector_store %arg8[%c40, %c0_32], %33 {strides = array<i32>} : memref<128x32xf32, #tpu.memory_space<vmem>>, vector<8x32xf32>,
    %c6 = arith.constant 6 : index
    %c0_33 = arith.constant 0 : index
    %c0_34 = arith.constant 0 : index
    %35 = vector.load %arg3[%c6, %c0_33, %c0_34] : memref<16x128x32xf32, #tpu.memory_space<vmem>>, vector<1x128x32xf32>
    %36 = vector.shape_cast %35 : vector<1x128x32xf32> to vector<128x32xf32>
    %cst_35 = arith.constant dense<0.000000e+00> : vector<8x32xf32>
    %37 = tpu.matmul %10, %36, %cst_35 {dimension_numbers = #tpu.dot_dimension_numbers<[1], [0], [0], [1], [0, 0, 1, 1], [], []>} : vector<8x128xf32>, vector<128x32xf32>, vector<8x32xf32> -> vector<8x32xf32>
    %c48 = arith.constant 48 : index
    %c0_36 = arith.constant 0 : index
    %38 = vector.load %arg8[%c48, %c0_36] : memref<128x32xf32, #tpu.memory_space<vmem>>, vector<8x32xf32>
    tpu.vector_store %arg8[%c48, %c0_36], %37 {strides = array<i32>} : memref<128x32xf32, #tpu.memory_space<vmem>>, vector<8x32xf32>,
    %c7 = arith.constant 7 : index
    %c0_37 = arith.constant 0 : index
    %c0_38 = arith.constant 0 : index
    %39 = vector.load %arg3[%c7, %c0_37, %c0_38] : memref<16x128x32xf32, #tpu.memory_space<vmem>>, vector<1x128x32xf32>
    %40 = vector.shape_cast %39 : vector<1x128x32xf32> to vector<128x32xf32>
    %cst_39 = arith.constant dense<0.000000e+00> : vector<8x32xf32>
    %41 = tpu.matmul %10, %40, %cst_39 {dimension_numbers = #tpu.dot_dimension_numbers<[1], [0], [0], [1], [0, 0, 1, 1], [], []>} : vector<8x128xf32>, vector<128x32xf32>, vector<8x32xf32> -> vector<8x32xf32>
    %c56 = arith.constant 56 : index
    %c0_40 = arith.constant 0 : index
    %42 = vector.load %arg8[%c56, %c0_40] : memref<128x32xf32, #tpu.memory_space<vmem>>, vector<8x32xf32>
    tpu.vector_store %arg8[%c56, %c0_40], %41 {strides = array<i32>} : memref<128x32xf32, #tpu.memory_space<vmem>>, vector<8x32xf32>,
    %c8_41 = arith.constant 8 : index
    %c0_42 = arith.constant 0 : index
    %c0_43 = arith.constant 0 : index
    %43 = vector.load %arg3[%c8_41, %c0_42, %c0_43] : memref<16x128x32xf32, #tpu.memory_space<vmem>>, vector<1x128x32xf32>
    %44 = vector.shape_cast %43 : vector<1x128x32xf32> to vector<128x32xf32>
    %cst_44 = arith.constant dense<0.000000e+00> : vector<8x32xf32>
    %45 = tpu.matmul %10, %44, %cst_44 {dimension_numbers = #tpu.dot_dimension_numbers<[1], [0], [0], [1], [0, 0, 1, 1], [], []>} : vector<8x128xf32>, vector<128x32xf32>, vector<8x32xf32> -> vector<8x32xf32>
    %c64 = arith.constant 64 : index
    %c0_45 = arith.constant 0 : index
    %46 = vector.load %arg8[%c64, %c0_45] : memref<128x32xf32, #tpu.memory_space<vmem>>, vector<8x32xf32>
    tpu.vector_store %arg8[%c64, %c0_45], %45 {strides = array<i32>} : memref<128x32xf32, #tpu.memory_space<vmem>>, vector<8x32xf32>,
    %c9 = arith.constant 9 : index
    %c0_46 = arith.constant 0 : index
    %c0_47 = arith.constant 0 : index
    %47 = vector.load %arg3[%c9, %c0_46, %c0_47] : memref<16x128x32xf32, #tpu.memory_space<vmem>>, vector<1x128x32xf32>
    %48 = vector.shape_cast %47 : vector<1x128x32xf32> to vector<128x32xf32>
    %cst_48 = arith.constant dense<0.000000e+00> : vector<8x32xf32>
    %49 = tpu.matmul %10, %48, %cst_48 {dimension_numbers = #tpu.dot_dimension_numbers<[1], [0], [0], [1], [0, 0, 1, 1], [], []>} : vector<8x128xf32>, vector<128x32xf32>, vector<8x32xf32> -> vector<8x32xf32>
    %c72 = arith.constant 72 : index
    %c0_49 = arith.constant 0 : index
    %50 = vector.load %arg8[%c72, %c0_49] : memref<128x32xf32, #tpu.memory_space<vmem>>, vector<8x32xf32>
    tpu.vector_store %arg8[%c72, %c0_49], %49 {strides = array<i32>} : memref<128x32xf32, #tpu.memory_space<vmem>>, vector<8x32xf32>,
    %c10 = arith.constant 10 : index
    %c0_50 = arith.constant 0 : index
    %c0_51 = arith.constant 0 : index
    %51 = vector.load %arg3[%c10, %c0_50, %c0_51] : memref<16x128x32xf32, #tpu.memory_space<vmem>>, vector<1x128x32xf32>
    %52 = vector.shape_cast %51 : vector<1x128x32xf32> to vector<128x32xf32>
    %cst_52 = arith.constant dense<0.000000e+00> : vector<8x32xf32>
    %53 = tpu.matmul %10, %52, %cst_52 {dimension_numbers = #tpu.dot_dimension_numbers<[1], [0], [0], [1], [0, 0, 1, 1], [], []>} : vector<8x128xf32>, vector<128x32xf32>, vector<8x32xf32> -> vector<8x32xf32>
    %c80 = arith.constant 80 : index
    %c0_53 = arith.constant 0 : index
    %54 = vector.load %arg8[%c80, %c0_53] : memref<128x32xf32, #tpu.memory_space<vmem>>, vector<8x32xf32>
    tpu.vector_store %arg8[%c80, %c0_53], %53 {strides = array<i32>} : memref<128x32xf32, #tpu.memory_space<vmem>>, vector<8x32xf32>,
    %c11 = arith.constant 11 : index
    %c0_54 = arith.constant 0 : index
    %c0_55 = arith.constant 0 : index
    %55 = vector.load %arg3[%c11, %c0_54, %c0_55] : memref<16x128x32xf32, #tpu.memory_space<vmem>>, vector<1x128x32xf32>
    %56 = vector.shape_cast %55 : vector<1x128x32xf32> to vector<128x32xf32>
    %cst_56 = arith.constant dense<0.000000e+00> : vector<8x32xf32>
    %57 = tpu.matmul %10, %56, %cst_56 {dimension_numbers = #tpu.dot_dimension_numbers<[1], [0], [0], [1], [0, 0, 1, 1], [], []>} : vector<8x128xf32>, vector<128x32xf32>, vector<8x32xf32> -> vector<8x32xf32>
    %c88 = arith.constant 88 : index
    %c0_57 = arith.constant 0 : index
    %58 = vector.load %arg8[%c88, %c0_57] : memref<128x32xf32, #tpu.memory_space<vmem>>, vector<8x32xf32>
    tpu.vector_store %arg8[%c88, %c0_57], %57 {strides = array<i32>} : memref<128x32xf32, #tpu.memory_space<vmem>>, vector<8x32xf32>,
    %c12 = arith.constant 12 : index
    %c0_58 = arith.constant 0 : index
    %c0_59 = arith.constant 0 : index
    %59 = vector.load %arg3[%c12, %c0_58, %c0_59] : memref<16x128x32xf32, #tpu.memory_space<vmem>>, vector<1x128x32xf32>
    %60 = vector.shape_cast %59 : vector<1x128x32xf32> to vector<128x32xf32>
    %cst_60 = arith.constant dense<0.000000e+00> : vector<8x32xf32>
    %61 = tpu.matmul %10, %60, %cst_60 {dimension_numbers = #tpu.dot_dimension_numbers<[1], [0], [0], [1], [0, 0, 1, 1], [], []>} : vector<8x128xf32>, vector<128x32xf32>, vector<8x32xf32> -> vector<8x32xf32>
    %c96 = arith.constant 96 : index
    %c0_61 = arith.constant 0 : index
    %62 = vector.load %arg8[%c96, %c0_61] : memref<128x32xf32, #tpu.memory_space<vmem>>, vector<8x32xf32>
    tpu.vector_store %arg8[%c96, %c0_61], %61 {strides = array<i32>} : memref<128x32xf32, #tpu.memory_space<vmem>>, vector<8x32xf32>,
    %c13 = arith.constant 13 : index
    %c0_62 = arith.constant 0 : index
    %c0_63 = arith.constant 0 : index
    %63 = vector.load %arg3[%c13, %c0_62, %c0_63] : memref<16x128x32xf32, #tpu.memory_space<vmem>>, vector<1x128x32xf32>
    %64 = vector.shape_cast %63 : vector<1x128x32xf32> to vector<128x32xf32>
    %cst_64 = arith.constant dense<0.000000e+00> : vector<8x32xf32>
    %65 = tpu.matmul %10, %64, %cst_64 {dimension_numbers = #tpu.dot_dimension_numbers<[1], [0], [0], [1], [0, 0, 1, 1], [], []>} : vector<8x128xf32>, vector<128x32xf32>, vector<8x32xf32> -> vector<8x32xf32>
    %c104 = arith.constant 104 : index
    %c0_65 = arith.constant 0 : index
    %66 = vector.load %arg8[%c104, %c0_65] : memref<128x32xf32, #tpu.memory_space<vmem>>, vector<8x32xf32>
    tpu.vector_store %arg8[%c104, %c0_65], %65 {strides = array<i32>} : memref<128x32xf32, #tpu.memory_space<vmem>>, vector<8x32xf32>,
    %c14 = arith.constant 14 : index
    %c0_66 = arith.constant 0 : index
    %c0_67 = arith.constant 0 : index
    %67 = vector.load %arg3[%c14, %c0_66, %c0_67] : memref<16x128x32xf32, #tpu.memory_space<vmem>>, vector<1x128x32xf32>
    %68 = vector.shape_cast %67 : vector<1x128x32xf32> to vector<128x32xf32>
    %cst_68 = arith.constant dense<0.000000e+00> : vector<8x32xf32>
    %69 = tpu.matmul %10, %68, %cst_68 {dimension_numbers = #tpu.dot_dimension_numbers<[1], [0], [0], [1], [0, 0, 1, 1], [], []>} : vector<8x128xf32>, vector<128x32xf32>, vector<8x32xf32> -> vector<8x32xf32>
    %c112 = arith.constant 112 : index
    %c0_69 = arith.constant 0 : index
    %70 = vector.load %arg8[%c112, %c0_69] : memref<128x32xf32, #tpu.memory_space<vmem>>, vector<8x32xf32>
    tpu.vector_store %arg8[%c112, %c0_69], %69 {strides = array<i32>} : memref<128x32xf32, #tpu.memory_space<vmem>>, vector<8x32xf32>,
    %c15 = arith.constant 15 : index
    %c0_70 = arith.constant 0 : index
    %c0_71 = arith.constant 0 : index
    %71 = vector.load %arg3[%c15, %c0_70, %c0_71] : memref<16x128x32xf32, #tpu.memory_space<vmem>>, vector<1x128x32xf32>
    %72 = vector.shape_cast %71 : vector<1x128x32xf32> to vector<128x32xf32>
    %cst_72 = arith.constant dense<0.000000e+00> : vector<8x32xf32>
    %73 = tpu.matmul %10, %72, %cst_72 {dimension_numbers = #tpu.dot_dimension_numbers<[1], [0], [0], [1], [0, 0, 1, 1], [], []>} : vector<8x128xf32>, vector<128x32xf32>, vector<8x32xf32> -> vector<8x32xf32>
    %c120 = arith.constant 120 : index
    %c0_73 = arith.constant 0 : index
    %74 = vector.load %arg8[%c120, %c0_73] : memref<128x32xf32, #tpu.memory_space<vmem>>, vector<8x32xf32>
    tpu.vector_store %arg8[%c120, %c0_73], %73 {strides = array<i32>} : memref<128x32xf32, #tpu.memory_space<vmem>>, vector<8x32xf32>,
    %c0_74 = arith.constant 0 : index
    %c0_75 = arith.constant 0 : index
    %75 = vector.load %arg4[%c0_74, %c0_75] : memref<16x128xf32, #tpu.memory_space<vmem>>, vector<16x128xf32>
    %c0_76 = arith.constant 0 : index
    %c0_77 = arith.constant 0 : index
    %76 = vector.load %arg8[%c0_76, %c0_77] : memref<128x32xf32, #tpu.memory_space<vmem>>, vector<128x32xf32>
    %cst_78 = arith.constant dense<0.000000e+00> : vector<16x32xf32>
    %77 = tpu.matmul %75, %76, %cst_78 {dimension_numbers = #tpu.dot_dimension_numbers<[1], [0], [0], [1], [0, 0, 1, 1], [], []>} : vector<16x128xf32>, vector<128x32xf32>, vector<16x32xf32> -> vector<16x32xf32>
    %cst_79 = arith.constant dense<0.000000e+00> : vector<16xf32>
    %78 = vector.multi_reduction <add>, %77, %cst_79 [1] : vector<16x32xf32> to vector<16xf32>
    %79 = vector.shape_cast %78 : vector<16xf32> to vector<16x1xf32>
    %cst_80 = arith.constant 3.200000e+01 : f32
    %80 = vector.broadcast %cst_80 : f32 to vector<16x1xf32>
    %81 = arith.divf %79, %80 : vector<16x1xf32>
    %82 = arith.mulf %77, %77 : vector<16x32xf32>
    %cst_81 = arith.constant dense<0.000000e+00> : vector<16xf32>
    %83 = vector.multi_reduction <add>, %82, %cst_81 [1] : vector<16x32xf32> to vector<16xf32>
    %84 = vector.shape_cast %83 : vector<16xf32> to vector<16x1xf32>
    %cst_82 = arith.constant 3.200000e+01 : f32
    %85 = vector.broadcast %cst_82 : f32 to vector<16x1xf32>
    %86 = arith.divf %84, %85 : vector<16x1xf32>
    %87 = arith.mulf %81, %81 : vector<16x1xf32>
    %88 = arith.subf %86, %87 : vector<16x1xf32>
    %cst_83 = arith.constant 0.000000e+00 : f32
    %89 = vector.broadcast %cst_83 : f32 to vector<16x1xf32>
    %90 = arith.maximumf %88, %89 : vector<16x1xf32>
    %91 = vector.broadcast %81 : vector<16x1xf32> to vector<16x32xf32>
    %92 = arith.subf %77, %91 : vector<16x32xf32>
    %cst_84 = arith.constant 9.99999974E-6 : f32
    %93 = vector.broadcast %cst_84 : f32 to vector<16x1xf32>
    %94 = arith.addf %90, %93 : vector<16x1xf32>
    %95 = math.rsqrt %94 : vector<16x1xf32>
    %96 = vector.broadcast %95 : vector<16x1xf32> to vector<16x32xf32>
    %97 = arith.mulf %92, %96 : vector<16x32xf32>
    %cst_85 = arith.constant 0.000000e+00 : f32
    %98 = vector.broadcast %cst_85 : f32 to vector<16x32xf32>
    %99 = arith.cmpf ogt, %97, %98 : vector<16x32xf32>
    %cst_86 = arith.constant 2.000000e-01 : f32
    %100 = vector.broadcast %cst_86 : f32 to vector<16x32xf32>
    %101 = arith.mulf %100, %97 : vector<16x32xf32>
    %102 = arith.select %99, %97, %101 : vector<16x32xi1>, vector<16x32xf32>
    %c0_87 = arith.constant 0 : index
    %c0_88 = arith.constant 0 : index
    %103 = vector.load %arg7[%c0_87, %c0_88] : memref<16x32xf32, #tpu.memory_space<vmem>>, vector<16x32xf32>
    tpu.vector_store %arg7[%c0_87, %c0_88], %102 {strides = array<i32>} : memref<16x32xf32, #tpu.memory_space<vmem>>, vector<16x32xf32>,
    %c0_89 = arith.constant 0 : index
    %c0_90 = arith.constant 0 : index
    %104 = vector.load %arg5[%c0_89, %c0_90] : memref<16x16xf32, #tpu.memory_space<vmem>>, vector<16x16xf32>
    %cst_91 = arith.constant 0.000000e+00 : f32
    %105 = vector.broadcast %cst_91 : f32 to vector<1x2xf32>
    %106 = vector.extract_strided_slice %102 {offsets = [0, 0], sizes = [16, 2], strides = [1, 1]} : vector<16x32xf32> to vector<16x2xf32>
    %107 = vector.extract_strided_slice %104 {offsets = [0, 0], sizes = [16, 1], strides = [1, 1]} : vector<16x16xf32> to vector<16x1xf32>
    %108 = vector.broadcast %107 : vector<16x1xf32> to vector<16x2xf32>
    %109 = arith.mulf %106, %108 : vector<16x2xf32>
    %cst_92 = arith.constant dense<0.000000e+00> : vector<2xf32>
    %110 = vector.multi_reduction <add>, %109, %cst_92 [0] : vector<16x2xf32> to vector<2xf32>
    %111 = vector.shape_cast %110 : vector<2xf32> to vector<1x2xf32>
    %112 = arith.addf %105, %111 : vector<1x2xf32>
    %113 = vector.extract_strided_slice %102 {offsets = [0, 2], sizes = [16, 2], strides = [1, 1]} : vector<16x32xf32> to vector<16x2xf32>
    %114 = vector.extract_strided_slice %104 {offsets = [0, 1], sizes = [16, 1], strides = [1, 1]} : vector<16x16xf32> to vector<16x1xf32>
    %115 = vector.broadcast %114 : vector<16x1xf32> to vector<16x2xf32>
    %116 = arith.mulf %113, %115 : vector<16x2xf32>
    %cst_93 = arith.constant dense<0.000000e+00> : vector<2xf32>
    %117 = vector.multi_reduction <add>, %116, %cst_93 [0] : vector<16x2xf32> to vector<2xf32>
    %118 = vector.shape_cast %117 : vector<2xf32> to vector<1x2xf32>
    %119 = arith.addf %112, %118 : vector<1x2xf32>
    %120 = vector.extract_strided_slice %102 {offsets = [0, 4], sizes = [16, 2], strides = [1, 1]} : vector<16x32xf32> to vector<16x2xf32>
    %121 = vector.extract_strided_slice %104 {offsets = [0, 2], sizes = [16, 1], strides = [1, 1]} : vector<16x16xf32> to vector<16x1xf32>
    %122 = vector.broadcast %121 : vector<16x1xf32> to vector<16x2xf32>
    %123 = arith.mulf %120, %122 : vector<16x2xf32>
    %cst_94 = arith.constant dense<0.000000e+00> : vector<2xf32>
    %124 = vector.multi_reduction <add>, %123, %cst_94 [0] : vector<16x2xf32> to vector<2xf32>
    %125 = vector.shape_cast %124 : vector<2xf32> to vector<1x2xf32>
    %126 = arith.addf %119, %125 : vector<1x2xf32>
    %127 = vector.extract_strided_slice %102 {offsets = [0, 6], sizes = [16, 2], strides = [1, 1]} : vector<16x32xf32> to vector<16x2xf32>
    %128 = vector.extract_strided_slice %104 {offsets = [0, 3], sizes = [16, 1], strides = [1, 1]} : vector<16x16xf32> to vector<16x1xf32>
    %129 = vector.broadcast %128 : vector<16x1xf32> to vector<16x2xf32>
    %130 = arith.mulf %127, %129 : vector<16x2xf32>
    %cst_95 = arith.constant dense<0.000000e+00> : vector<2xf32>
    %131 = vector.multi_reduction <add>, %130, %cst_95 [0] : vector<16x2xf32> to vector<2xf32>
    %132 = vector.shape_cast %131 : vector<2xf32> to vector<1x2xf32>
    %133 = arith.addf %126, %132 : vector<1x2xf32>
    %134 = vector.extract_strided_slice %102 {offsets = [0, 8], sizes = [16, 2], strides = [1, 1]} : vector<16x32xf32> to vector<16x2xf32>
    %135 = vector.extract_strided_slice %104 {offsets = [0, 4], sizes = [16, 1], strides = [1, 1]} : vector<16x16xf32> to vector<16x1xf32>
    %136 = vector.broadcast %135 : vector<16x1xf32> to vector<16x2xf32>
    %137 = arith.mulf %134, %136 : vector<16x2xf32>
    %cst_96 = arith.constant dense<0.000000e+00> : vector<2xf32>
    %138 = vector.multi_reduction <add>, %137, %cst_96 [0] : vector<16x2xf32> to vector<2xf32>
    %139 = vector.shape_cast %138 : vector<2xf32> to vector<1x2xf32>
    %140 = arith.addf %133, %139 : vector<1x2xf32>
    %141 = vector.extract_strided_slice %102 {offsets = [0, 10], sizes = [16, 2], strides = [1, 1]} : vector<16x32xf32> to vector<16x2xf32>
    %142 = vector.extract_strided_slice %104 {offsets = [0, 5], sizes = [16, 1], strides = [1, 1]} : vector<16x16xf32> to vector<16x1xf32>
    %143 = vector.broadcast %142 : vector<16x1xf32> to vector<16x2xf32>
    %144 = arith.mulf %141, %143 : vector<16x2xf32>
    %cst_97 = arith.constant dense<0.000000e+00> : vector<2xf32>
    %145 = vector.multi_reduction <add>, %144, %cst_97 [0] : vector<16x2xf32> to vector<2xf32>
    %146 = vector.shape_cast %145 : vector<2xf32> to vector<1x2xf32>
    %147 = arith.addf %140, %146 : vector<1x2xf32>
    %148 = vector.extract_strided_slice %102 {offsets = [0, 12], sizes = [16, 2], strides = [1, 1]} : vector<16x32xf32> to vector<16x2xf32>
    %149 = vector.extract_strided_slice %104 {offsets = [0, 6], sizes = [16, 1], strides = [1, 1]} : vector<16x16xf32> to vector<16x1xf32>
    %150 = vector.broadcast %149 : vector<16x1xf32> to vector<16x2xf32>
    %151 = arith.mulf %148, %150 : vector<16x2xf32>
    %cst_98 = arith.constant dense<0.000000e+00> : vector<2xf32>
    %152 = vector.multi_reduction <add>, %151, %cst_98 [0] : vector<16x2xf32> to vector<2xf32>
    %153 = vector.shape_cast %152 : vector<2xf32> to vector<1x2xf32>
    %154 = arith.addf %147, %153 : vector<1x2xf32>
    %155 = vector.extract_strided_slice %102 {offsets = [0, 14], sizes = [16, 2], strides = [1, 1]} : vector<16x32xf32> to vector<16x2xf32>
    %156 = vector.extract_strided_slice %104 {offsets = [0, 7], sizes = [16, 1], strides = [1, 1]} : vector<16x16xf32> to vector<16x1xf32>
    %157 = vector.broadcast %156 : vector<16x1xf32> to vector<16x2xf32>
    %158 = arith.mulf %155, %157 : vector<16x2xf32>
    %cst_99 = arith.constant dense<0.000000e+00> : vector<2xf32>
    %159 = vector.multi_reduction <add>, %158, %cst_99 [0] : vector<16x2xf32> to vector<2xf32>
    %160 = vector.shape_cast %159 : vector<2xf32> to vector<1x2xf32>
    %161 = arith.addf %154, %160 : vector<1x2xf32>
    %162 = vector.extract_strided_slice %102 {offsets = [0, 16], sizes = [16, 2], strides = [1, 1]} : vector<16x32xf32> to vector<16x2xf32>
    %163 = vector.extract_strided_slice %104 {offsets = [0, 8], sizes = [16, 1], strides = [1, 1]} : vector<16x16xf32> to vector<16x1xf32>
    %164 = vector.broadcast %163 : vector<16x1xf32> to vector<16x2xf32>
    %165 = arith.mulf %162, %164 : vector<16x2xf32>
    %cst_100 = arith.constant dense<0.000000e+00> : vector<2xf32>
    %166 = vector.multi_reduction <add>, %165, %cst_100 [0] : vector<16x2xf32> to vector<2xf32>
    %167 = vector.shape_cast %166 : vector<2xf32> to vector<1x2xf32>
    %168 = arith.addf %161, %167 : vector<1x2xf32>
    %169 = vector.extract_strided_slice %102 {offsets = [0, 18], sizes = [16, 2], strides = [1, 1]} : vector<16x32xf32> to vector<16x2xf32>
    %170 = vector.extract_strided_slice %104 {offsets = [0, 9], sizes = [16, 1], strides = [1, 1]} : vector<16x16xf32> to vector<16x1xf32>
    %171 = vector.broadcast %170 : vector<16x1xf32> to vector<16x2xf32>
    %172 = arith.mulf %169, %171 : vector<16x2xf32>
    %cst_101 = arith.constant dense<0.000000e+00> : vector<2xf32>
    %173 = vector.multi_reduction <add>, %172, %cst_101 [0] : vector<16x2xf32> to vector<2xf32>
    %174 = vector.shape_cast %173 : vector<2xf32> to vector<1x2xf32>
    %175 = arith.addf %168, %174 : vector<1x2xf32>
    %176 = vector.extract_strided_slice %102 {offsets = [0, 20], sizes = [16, 2], strides = [1, 1]} : vector<16x32xf32> to vector<16x2xf32>
    %177 = vector.extract_strided_slice %104 {offsets = [0, 10], sizes = [16, 1], strides = [1, 1]} : vector<16x16xf32> to vector<16x1xf32>
    %178 = vector.broadcast %177 : vector<16x1xf32> to vector<16x2xf32>
    %179 = arith.mulf %176, %178 : vector<16x2xf32>
    %cst_102 = arith.constant dense<0.000000e+00> : vector<2xf32>
    %180 = vector.multi_reduction <add>, %179, %cst_102 [0] : vector<16x2xf32> to vector<2xf32>
    %181 = vector.shape_cast %180 : vector<2xf32> to vector<1x2xf32>
    %182 = arith.addf %175, %181 : vector<1x2xf32>
    %183 = vector.extract_strided_slice %102 {offsets = [0, 22], sizes = [16, 2], strides = [1, 1]} : vector<16x32xf32> to vector<16x2xf32>
    %184 = vector.extract_strided_slice %104 {offsets = [0, 11], sizes = [16, 1], strides = [1, 1]} : vector<16x16xf32> to vector<16x1xf32>
    %185 = vector.broadcast %184 : vector<16x1xf32> to vector<16x2xf32>
    %186 = arith.mulf %183, %185 : vector<16x2xf32>
    %cst_103 = arith.constant dense<0.000000e+00> : vector<2xf32>
    %187 = vector.multi_reduction <add>, %186, %cst_103 [0] : vector<16x2xf32> to vector<2xf32>
    %188 = vector.shape_cast %187 : vector<2xf32> to vector<1x2xf32>
    %189 = arith.addf %182, %188 : vector<1x2xf32>
    %190 = vector.extract_strided_slice %102 {offsets = [0, 24], sizes = [16, 2], strides = [1, 1]} : vector<16x32xf32> to vector<16x2xf32>
    %191 = vector.extract_strided_slice %104 {offsets = [0, 12], sizes = [16, 1], strides = [1, 1]} : vector<16x16xf32> to vector<16x1xf32>
    %192 = vector.broadcast %191 : vector<16x1xf32> to vector<16x2xf32>
    %193 = arith.mulf %190, %192 : vector<16x2xf32>
    %cst_104 = arith.constant dense<0.000000e+00> : vector<2xf32>
    %194 = vector.multi_reduction <add>, %193, %cst_104 [0] : vector<16x2xf32> to vector<2xf32>
    %195 = vector.shape_cast %194 : vector<2xf32> to vector<1x2xf32>
    %196 = arith.addf %189, %195 : vector<1x2xf32>
    %197 = vector.extract_strided_slice %102 {offsets = [0, 26], sizes = [16, 2], strides = [1, 1]} : vector<16x32xf32> to vector<16x2xf32>
    %198 = vector.extract_strided_slice %104 {offsets = [0, 13], sizes = [16, 1], strides = [1, 1]} : vector<16x16xf32> to vector<16x1xf32>
    %199 = vector.broadcast %198 : vector<16x1xf32> to vector<16x2xf32>
    %200 = arith.mulf %197, %199 : vector<16x2xf32>
    %cst_105 = arith.constant dense<0.000000e+00> : vector<2xf32>
    %201 = vector.multi_reduction <add>, %200, %cst_105 [0] : vector<16x2xf32> to vector<2xf32>
    %202 = vector.shape_cast %201 : vector<2xf32> to vector<1x2xf32>
    %203 = arith.addf %196, %202 : vector<1x2xf32>
    %204 = vector.extract_strided_slice %102 {offsets = [0, 28], sizes = [16, 2], strides = [1, 1]} : vector<16x32xf32> to vector<16x2xf32>
    %205 = vector.extract_strided_slice %104 {offsets = [0, 14], sizes = [16, 1], strides = [1, 1]} : vector<16x16xf32> to vector<16x1xf32>
    %206 = vector.broadcast %205 : vector<16x1xf32> to vector<16x2xf32>
    %207 = arith.mulf %204, %206 : vector<16x2xf32>
    %cst_106 = arith.constant dense<0.000000e+00> : vector<2xf32>
    %208 = vector.multi_reduction <add>, %207, %cst_106 [0] : vector<16x2xf32> to vector<2xf32>
    %209 = vector.shape_cast %208 : vector<2xf32> to vector<1x2xf32>
    %210 = arith.addf %203, %209 : vector<1x2xf32>
    %211 = vector.extract_strided_slice %102 {offsets = [0, 30], sizes = [16, 2], strides = [1, 1]} : vector<16x32xf32> to vector<16x2xf32>
    %212 = vector.extract_strided_slice %104 {offsets = [0, 15], sizes = [16, 1], strides = [1, 1]} : vector<16x16xf32> to vector<16x1xf32>
    %213 = vector.broadcast %212 : vector<16x1xf32> to vector<16x2xf32>
    %214 = arith.mulf %211, %213 : vector<16x2xf32>
    %cst_107 = arith.constant dense<0.000000e+00> : vector<2xf32>
    %215 = vector.multi_reduction <add>, %214, %cst_107 [0] : vector<16x2xf32> to vector<2xf32>
    %216 = vector.shape_cast %215 : vector<2xf32> to vector<1x2xf32>
    %217 = arith.addf %210, %216 : vector<1x2xf32>
    %cst_108 = arith.constant 0.000000e+00 : f32
    %218 = vector.broadcast %cst_108 : f32 to vector<1x2xf32>
    %219 = arith.cmpf ogt, %217, %218 : vector<1x2xf32>
    %cst_109 = arith.constant 2.000000e-01 : f32
    %220 = vector.broadcast %cst_109 : f32 to vector<1x2xf32>
    %221 = arith.mulf %220, %217 : vector<1x2xf32>
    %222 = arith.select %219, %217, %221 : vector<1x2xi1>, vector<1x2xf32>
    %c0_110 = arith.constant 0 : index
    %c0_111 = arith.constant 0 : index
    %223 = vector.load %arg6[%c0_110, %c0_111] : memref<1x2xf32, #tpu.memory_space<vmem>>, vector<1x2xf32>
    tpu.vector_store %arg6[%c0_110, %c0_111], %222 {strides = array<i32>} : memref<1x2xf32, #tpu.memory_space<vmem>>, vector<1x2xf32>,
    return
  }
}

</mosaic_0001>

<llo_original>
// kernel: dcgan_discriminator_forward.1
$region0: #{dcgan_discriminator_forward.1}
  #allocation0 [shape = 'u32[]', space=smem, size = 0x4, offset = 0x4, fixed_abs, tag = 'smem constant byte address 0x4 - core index']
  #allocation1 [shape = 'u32[144,128]{1,0:T(1,128)}', space=vmem, size = 0x12000, scoped, tag = 'internal scratch']
  #allocation2 [shape = 'f32[128,32]{1,0:T(8,128)}', space=vmem, size = 0x10000, scoped, tag = 'scratch operand']
  %s0 = inlined_call_operand.vmem [shape: f32[64,128], index: 0, kind: input, shape index: {}]
  %s1 = inlined_call_operand.vmem [shape: f32[8,64], index: 1, kind: input, shape index: {}]
  %s2 = inlined_call_operand.vmem [shape: f32[8,1], index: 2, kind: input, shape index: {}]
  %s3 = inlined_call_operand.vmem [shape: f32[16,128,32], index: 3, kind: input, shape index: {}]
  %s4 = inlined_call_operand.vmem [shape: f32[16,128], index: 4, kind: input, shape index: {}]
  %s5 = inlined_call_operand.vmem [shape: f32[16,16], index: 5, kind: input, shape index: {}]
  %s6 = inlined_call_operand.hbm [shape: f32[1,2], index: 6, kind: output, shape index: {0}]
  %s7 = inlined_call_operand.hbm [shape: f32[16,32], index: 7, kind: output, shape index: {1}]
  %8 = xla_tuple %s6, %s7
  %s9 = sld [smem:[#allocation0]]
  $region42: #{dcgan_discriminator_forward.1} parent=0
    _
  %s11 = ssub.s32 1, %s9
  %s12 = scalar_select 0, %s11, %s9
  $region1: #{dcgan_discriminator_forward.1} parent=0
    #allocation3 [shape = 'u8[512]{0}', space=vmem, size = 0x400, scoped, tag = 'output window, operand 0, single buffered']
    #allocation4 [shape = 's32[1]{0}', space=sflag, size = 0x4, scoped, tag = 'scoped memory for dcgan_discriminator_forward.1']
    #allocation5 [shape = 'u8[8192]{0}', space=vmem, size = 0x2000, scoped, tag = 'output window, operand 1, single buffered']
    #allocation6 [shape = 's32[1]{0}', space=sflag, size = 0x4, scoped, tag = 'scoped memory for dcgan_discriminator_forward.1']
    %13 = vsyncpa [#allocation4], 0
    %14 = vsyncpa [#allocation6], 0
    // Predicated region
    $region2: #{dcgan_discriminator_forward.1} parent=1 // pred_check
      _
    $region3: #{dcgan_discriminator_forward.1} parent=1 // pred_check_branch
      %16 = sbr.rel (0) target = $region5
    $region4: #{dcgan_discriminator_forward.1} parent=1 // pred_region
      _
    $region5: #{dcgan_discriminator_forward.1} parent=1 // pred_fallthru
      _
    // Predicated region
    $region6: #{dcgan_discriminator_forward.1} parent=1 // pred_check
      _
    $region7: #{dcgan_discriminator_forward.1} parent=1 // pred_check_branch
      %18 = sbr.rel (0) target = $region9
    $region8: #{dcgan_discriminator_forward.1} parent=1 // pred_region
      _
    $region9: #{dcgan_discriminator_forward.1} parent=1 // pred_fallthru
      _
    // Predicated region
    $region10: #{dcgan_discriminator_forward.1} parent=1 // pred_check
      _
    $region11: #{dcgan_discriminator_forward.1} parent=1 // pred_check_branch
      %20 = sbr.rel (0) target = $region13
    $region12: #{dcgan_discriminator_forward.1} parent=1 // pred_region
      _
    $region13: #{dcgan_discriminator_forward.1} parent=1 // pred_fallthru
      _
    // Predicated region
    $region14: #{dcgan_discriminator_forward.1} parent=1 // pred_check
      _
    $region15: #{dcgan_discriminator_forward.1} parent=1 // pred_check_branch
      %22 = sbr.rel (0) target = $region17
    $region16: #{dcgan_discriminator_forward.1} parent=1 // pred_region
      _
    $region17: #{dcgan_discriminator_forward.1} parent=1 // pred_fallthru
      _
    // Predicated region
    $region18: #{dcgan_discriminator_forward.1} parent=1 // pred_check
      _
    $region19: #{dcgan_discriminator_forward.1} parent=1 // pred_check_branch
      %24 = sbr.rel (0) target = $region21
    $region20: #{dcgan_discriminator_forward.1} parent=1 // pred_region
      _
    $region21: #{dcgan_discriminator_forward.1} parent=1 // pred_fallthru
      _
    // Predicated region
    $region22: #{dcgan_discriminator_forward.1} parent=1 // pred_check
      _
    $region23: #{dcgan_discriminator_forward.1} parent=1 // pred_check_branch
      %26 = sbr.rel (0) target = $region25
    $region24: #{dcgan_discriminator_forward.1} parent=1 // pred_region
      _
    $region25: #{dcgan_discriminator_forward.1} parent=1 // pred_fallthru
      _
    %v27 = vld [vmem:[%s1] sm:$0xff]
    %v28 = vld [vmem:[%s0] sm:$0xff]
    %v29 = vld [vmem:[%s0 + $0x8] sm:$0xff]
    %v30 = vld [vmem:[%s0 + $0x10] sm:$0xff]
    %v31 = vld [vmem:[%s0 + $0x18] sm:$0xff]
    %v32 = vld [vmem:[%s0 + $0x20] sm:$0xff]
    %v33 = vld [vmem:[%s0 + $0x28] sm:$0xff]
    %v34 = vld [vmem:[%s0 + $0x30] sm:$0xff]
    %v35 = vld [vmem:[%s0 + $0x38] sm:$0xff]
    %v36 = vld [vmem:[%s2] sm:$0xff]
    %38 = vset.pattern.permute.xlu0 0
    %39 = vperm.xlu0 %38, %v36
    %v40 = vpop.permute.xlu0 %39
    %vm42 = vcmask 523264
    %v44 = vsel %vm42, %v27, 0
    %46 = vmatprep.subr.mxu0 0.0
    %47 = vmatpush1.msra.mxu0 %v28
    %48 = vmatprep.subr.mxu0 0.0
    %49 = vmatpush1.msra.mxu0 %v29
    %50 = vmatprep.subr.mxu0 0.0
    %51 = vmatpush1.msra.mxu0 %v30
    %52 = vmatprep.subr.mxu0 0.0
    %53 = vmatpush1.msra.mxu0 %v31
    %54 = vmatprep.subr.mxu0 0.0
    %55 = vmatpush1.msra.mxu0 %v32
    %56 = vmatprep.subr.mxu0 0.0
    %57 = vmatpush1.msra.mxu0 %v33
    %58 = vmatprep.subr.mxu0 0.0
    %59 = vmatpush1.msra.mxu0 %v34
    %60 = vmatprep.subr.mxu0 0.0
    %61 = vmatpush1.msra.mxu0 %v35
    %62 = vmatprep.subr.mxu0 0.0
    %63 = vmatpush1.msra.mxu0 0.0
    %64 = vmatprep.subr.mxu0 0.0
    %65 = vmatpush1.msra.mxu0 0.0
    %66 = vmatprep.subr.mxu0 0.0
    %67 = vmatpush1.msra.mxu0 0.0
    %68 = vmatprep.subr.mxu0 0.0
    %69 = vmatpush1.msra.mxu0 0.0
    %70 = vmatprep.subr.mxu0 0.0
    %71 = vmatpush1.msra.mxu0 0.0
    %72 = vmatprep.subr.mxu0 0.0
    %73 = vmatpush1.msra.mxu0 0.0
    %74 = vmatprep.subr.mxu0 0.0
    %75 = vmatpush1.msra.mxu0 0.0
    %76 = vmatprep.subr.mxu0 0.0
    %77 = vmatpush1.msra.mxu0 0.0
    %78 = vmatprep.subr.mxu0 0.0
    %79 = vmatpush1.msra.mxu0 0.0
    %80 = vmatprep.subr.mxu0 0.0
    %81 = vmatpush1.msra.mxu0 0.0
    %82 = vmatprep.subr.mxu0 0.0
    %83 = vmatpush1.msra.mxu0 0.0
    %84 = vmatprep.subr.mxu0 0.0
    %85 = vmatpush1.msra.mxu0 0.0
    %86 = vmatprep.subr.mxu0 0.0
    %87 = vmatpush1.msra.mxu0 0.0
    %88 = vmatprep.subr.mxu0 0.0
    %89 = vmatpush1.msra.mxu0 0.0
    %90 = vmatprep.subr.mxu0 0.0
    %91 = vmatpush1.msra.mxu0 0.0
    %92 = vmatprep.subr.mxu0 0.0
    %93 = vmatpush1.msra.mxu0 0.0
    %94 = vmatprep.subr.mxu0 0.0
    %95 = vmatpush1.msra.mxu0 0.0
    %96 = vmatprep.subr.mxu0 0.0
    %97 = vmatpush1.msra.mxu0 0.0
    %98 = vmatprep.subr.mxu0 0.0
    %99 = vmatpush1.msra.mxu0 0.0
    %100 = vmatprep.subr.mxu0 0.0
    %101 = vmatpush1.msra.mxu0 0.0
    %102 = vmatprep.subr.mxu0 0.0
    %103 = vmatpush1.msra.mxu0 0.0
    %104 = vmatprep.subr.mxu0 0.0
    %105 = vmatpush1.msra.mxu0 0.0
    %106 = vmatprep.subr.mxu0 0.0
    %107 = vmatpush1.msra.mxu0 0.0
    %108 = vmatprep.subr.mxu0 0.0
    %109 = vmatpush1.msra.mxu0 0.0
    %110 = vmatprep.mubr.f32.mxu0 0.0
    %111 = vmatmul.mubr.f32.gmra.mrb[0].mxu0 %v44
    %v112 = vpop.f32.mrb[0].mxu0
    %v113 = vadd.f32 %v40, %v112
    %v114 = vpop.f32.mrb[0].mxu0
    %115 = vdwg.mxu0
    %vm116 = vcmp.gt.f32.partialorder %v113, 0.0
    %v117 = vmul.f32 %v113, 0.2
    %v118 = vsel %vm116, %v113, %v117
    %v119 = vld [vmem:[%s3] sm:$0xff]
    %v120 = vld [vmem:[%s3 + $0x8] sm:$0xff]
    %v121 = vld [vmem:[%s3 + $0x10] sm:$0xff]
    %v122 = vld [vmem:[%s3 + $0x18] sm:$0xff]
    %v123 = vld [vmem:[%s3 + $0x20] sm:$0xff]
    %v124 = vld [vmem:[%s3 + $0x28] sm:$0xff]
    %v125 = vld [vmem:[%s3 + $0x30] sm:$0xff]
    %v126 = vld [vmem:[%s3 + $0x38] sm:$0xff]
    %v127 = vld [vmem:[%s3 + $0x40] sm:$0xff]
    %v128 = vld [vmem:[%s3 + $0x48] sm:$0xff]
    %v129 = vld [vmem:[%s3 + $0x50] sm:$0xff]
    %v130 = vld [vmem:[%s3 + $0x58] sm:$0xff]
    %v131 = vld [vmem:[%s3 + $0x60] sm:$0xff]
    %v132 = vld [vmem:[%s3 + $0x68] sm:$0xff]
    %v133 = vld [vmem:[%s3 + $0x70] sm:$0xff]
    %v134 = vld [vmem:[%s3 + $0x78] sm:$0xff]
    %135 = vmatprep.subr.mxu0 0.0
    %136 = vmatpush1.msra.mxu0 %v119
    %137 = vmatprep.subr.mxu0 0.0
    %138 = vmatpush1.msra.mxu0 %v120
    %139 = vmatprep.subr.mxu0 0.0
    %140 = vmatpush1.msra.mxu0 %v121
    %141 = vmatprep.subr.mxu0 0.0
    %142 = vmatpush1.msra.mxu0 %v122
    %143 = vmatprep.subr.mxu0 0.0
    %144 = vmatpush1.msra.mxu0 %v123
    %145 = vmatprep.subr.mxu0 0.0
    %146 = vmatpush1.msra.mxu0 %v124
    %147 = vmatprep.subr.mxu0 0.0
    %148 = vmatpush1.msra.mxu0 %v125
    %149 = vmatprep.subr.mxu0 0.0
    %150 = vmatpush1.msra.mxu0 %v126
    %151 = vmatprep.subr.mxu0 0.0
    %152 = vmatpush1.msra.mxu0 %v127
    %153 = vmatprep.subr.mxu0 0.0
    %154 = vmatpush1.msra.mxu0 %v128
    %155 = vmatprep.subr.mxu0 0.0
    %156 = vmatpush1.msra.mxu0 %v129
    %157 = vmatprep.subr.mxu0 0.0
    %158 = vmatpush1.msra.mxu0 %v130
    %159 = vmatprep.subr.mxu0 0.0
    %160 = vmatpush1.msra.mxu0 %v131
    %161 = vmatprep.subr.mxu0 0.0
    %162 = vmatpush1.msra.mxu0 %v132
    %163 = vmatprep.subr.mxu0 0.0
    %164 = vmatpush1.msra.mxu0 %v133
    %165 = vmatprep.subr.mxu0 0.0
    %166 = vmatpush1.msra.mxu0 %v134
    %167 = vmatprep.subr.mxu0 0.0
    %168 = vmatpush1.msra.mxu0 0.0
    %169 = vmatprep.subr.mxu0 0.0
    %170 = vmatpush1.msra.mxu0 0.0
    %171 = vmatprep.subr.mxu0 0.0
    %172 = vmatpush1.msra.mxu0 0.0
    %173 = vmatprep.subr.mxu0 0.0
    %174 = vmatpush1.msra.mxu0 0.0
    %175 = vmatprep.subr.mxu0 0.0
    %176 = vmatpush1.msra.mxu0 0.0
    %177 = vmatprep.subr.mxu0 0.0
    %178 = vmatpush1.msra.mxu0 0.0
    %179 = vmatprep.subr.mxu0 0.0
    %180 = vmatpush1.msra.mxu0 0.0
    %181 = vmatprep.subr.mxu0 0.0
    %182 = vmatpush1.msra.mxu0 0.0
    %183 = vmatprep.subr.mxu0 0.0
    %184 = vmatpush1.msra.mxu0 0.0
    %185 = vmatprep.subr.mxu0 0.0
    %186 = vmatpush1.msra.mxu0 0.0
    %187 = vmatprep.subr.mxu0 0.0
    %188 = vmatpush1.msra.mxu0 0.0
    %189 = vmatprep.subr.mxu0 0.0
    %190 = vmatpush1.msra.mxu0 0.0
    %191 = vmatprep.subr.mxu0 0.0
    %192 = vmatpush1.msra.mxu0 0.0
    %193 = vmatprep.subr.mxu0 0.0
    %194 = vmatpush1.msra.mxu0 0.0
    %195 = vmatprep.subr.mxu0 0.0
    %196 = vmatpush1.msra.mxu0 0.0
    %197 = vmatprep.subr.mxu0 0.0
    %198 = vmatpush1.msra.mxu0 0.0
    %199 = vmatprep.mubr.f32.mxu0 0.0
    %200 = vmatmul.mubr.f32.gmra.mrb[0].mxu0 %v118
    %v201 = vpop.f32.mrb[0].mxu0
    %v202 = vadd.f32 0.0, %v201
    %v203 = vpop.f32.mrb[0].mxu0
    %204 = vdwg.mxu0
    %vm205 = vcmask 261120
    %206 = vst.msk [vmem:[#allocation2] sm:$0xff] %vm205, %v202
    %s207 = scalar_lea.vmem %s3, 128
    %v208 = vld [vmem:[%s207] sm:$0xff]
    %v209 = vld [vmem:[%s207 + $0x8] sm:$0xff]
    %v210 = vld [vmem:[%s207 + $0x10] sm:$0xff]
    %v211 = vld [vmem:[%s207 + $0x18] sm:$0xff]
    %v212 = vld [vmem:[%s207 + $0x20] sm:$0xff]
    %v213 = vld [vmem:[%s207 + $0x28] sm:$0xff]
    %v214 = vld [vmem:[%s207 + $0x30] sm:$0xff]
    %v215 = vld [vmem:[%s207 + $0x38] sm:$0xff]
    %v216 = vld [vmem:[%s207 + $0x40] sm:$0xff]
    %v217 = vld [vmem:[%s207 + $0x48] sm:$0xff]
    %v218 = vld [vmem:[%s207 + $0x50] sm:$0xff]
    %v219 = vld [vmem:[%s207 + $0x58] sm:$0xff]
    %v220 = vld [vmem:[%s207 + $0x60] sm:$0xff]
    %v221 = vld [vmem:[%s207 + $0x68] sm:$0xff]
    %v222 = vld [vmem:[%s207 + $0x70] sm:$0xff]
    %v223 = vld [vmem:[%s207 + $0x78] sm:$0xff]
    %224 = vmatprep.subr.mxu0 0.0
    %225 = vmatpush1.msra.mxu0 %v208
    %226 = vmatprep.subr.mxu0 0.0
    %227 = vmatpush1.msra.mxu0 %v209
    %228 = vmatprep.subr.mxu0 0.0
    %229 = vmatpush1.msra.mxu0 %v210
    %230 = vmatprep.subr.mxu0 0.0
    %231 = vmatpush1.msra.mxu0 %v211
    %232 = vmatprep.subr.mxu0 0.0
    %233 = vmatpush1.msra.mxu0 %v212
    %234 = vmatprep.subr.mxu0 0.0
    %235 = vmatpush1.msra.mxu0 %v213
    %236 = vmatprep.subr.mxu0 0.0
    %237 = vmatpush1.msra.mxu0 %v214
    %238 = vmatprep.subr.mxu0 0.0
    %239 = vmatpush1.msra.mxu0 %v215
    %240 = vmatprep.subr.mxu0 0.0
    %241 = vmatpush1.msra.mxu0 %v216
    %242 = vmatprep.subr.mxu0 0.0
    %243 = vmatpush1.msra.mxu0 %v217
    %244 = vmatprep.subr.mxu0 0.0
    %245 = vmatpush1.msra.mxu0 %v218
    %246 = vmatprep.subr.mxu0 0.0
    %247 = vmatpush1.msra.mxu0 %v219
    %248 = vmatprep.subr.mxu0 0.0
    %249 = vmatpush1.msra.mxu0 %v220
    %250 = vmatprep.subr.mxu0 0.0
    %251 = vmatpush1.msra.mxu0 %v221
    %252 = vmatprep.subr.mxu0 0.0
    %253 = vmatpush1.msra.mxu0 %v222
    %254 = vmatprep.subr.mxu0 0.0
    %255 = vmatpush1.msra.mxu0 %v223
    %256 = vmatprep.subr.mxu0 0.0
    %257 = vmatpush1.msra.mxu0 0.0
    %258 = vmatprep.subr.mxu0 0.0
    %259 = vmatpush1.msra.mxu0 0.0
    %260 = vmatprep.subr.mxu0 0.0
    %261 = vmatpush1.msra.mxu0 0.0
    %262 = vmatprep.subr.mxu0 0.0
    %263 = vmatpush1.msra.mxu0 0.0
    %264 = vmatprep.subr.mxu0 0.0
    %265 = vmatpush1.msra.mxu0 0.0
    %266 = vmatprep.subr.mxu0 0.0
    %267 = vmatpush1.msra.mxu0 0.0
    %268 = vmatprep.subr.mxu0 0.0
    %269 = vmatpush1.msra.mxu0 0.0
    %270 = vmatprep.subr.mxu0 0.0
    %271 = vmatpush1.msra.mxu0 0.0
    %272 = vmatprep.subr.mxu0 0.0
    %273 = vmatpush1.msra.mxu0 0.0
    %274 = vmatprep.subr.mxu0 0.0
    %275 = vmatpush1.msra.mxu0 0.0
    %276 = vmatprep.subr.mxu0 0.0
    %277 = vmatpush1.msra.mxu0 0.0
    %278 = vmatprep.subr.mxu0 0.0
    %279 = vmatpush1.msra.mxu0 0.0
    %280 = vmatprep.subr.mxu0 0.0
    %281 = vmatpush1.msra.mxu0 0.0
    %282 = vmatprep.subr.mxu0 0.0
    %283 = vmatpush1.msra.mxu0 0.0
    %284 = vmatprep.subr.mxu0 0.0
    %285 = vmatpush1.msra.mxu0 0.0
    %286 = vmatprep.subr.mxu0 0.0
    %287 = vmatpush1.msra.mxu0 0.0
    %288 = vmatprep.mubr.f32.mxu0 0.0
    %289 = vmatmul.mubr.f32.gmra.mrb[0].mxu0 %v118
    %v290 = vpop.f32.mrb[0].mxu0
    %v291 = vadd.f32 0.0, %v290
    %v292 = vpop.f32.mrb[0].mxu0
    %293 = vdwg.mxu0
    %294 = vst.msk [vmem:[#allocation2 + $0x8] sm:$0xff] %vm205, %v291
    %s295 = scalar_lea.vmem %s3, 256
    %v296 = vld [vmem:[%s295] sm:$0xff]
    %v297 = vld [vmem:[%s295 + $0x8] sm:$0xff]
    %v298 = vld [vmem:[%s295 + $0x10] sm:$0xff]
    %v299 = vld [vmem:[%s295 + $0x18] sm:$0xff]
    %v300 = vld [vmem:[%s295 + $0x20] sm:$0xff]
    %v301 = vld [vmem:[%s295 + $0x28] sm:$0xff]
    %v302 = vld [vmem:[%s295 + $0x30] sm:$0xff]
    %v303 = vld [vmem:[%s295 + $0x38] sm:$0xff]
    %v304 = vld [vmem:[%s295 + $0x40] sm:$0xff]
    %v305 = vld [vmem:[%s295 + $0x48] sm:$0xff]
    %v306 = vld [vmem:[%s295 + $0x50] sm:$0xff]
    %v307 = vld [vmem:[%s295 + $0x58] sm:$0xff]
    %v308 = vld [vmem:[%s295 + $0x60] sm:$0xff]
    %v309 = vld [vmem:[%s295 + $0x68] sm:$0xff]
    %v310 = vld [vmem:[%s295 + $0x70] sm:$0xff]
    %v311 = vld [vmem:[%s295 + $0x78] sm:$0xff]
    %312 = vmatprep.subr.mxu0 0.0
    %313 = vmatpush1.msra.mxu0 %v296
    %314 = vmatprep.subr.mxu0 0.0
    %315 = vmatpush1.msra.mxu0 %v297
    %316 = vmatprep.subr.mxu0 0.0
    %317 = vmatpush1.msra.mxu0 %v298
    %318 = vmatprep.subr.mxu0 0.0
    %319 = vmatpush1.msra.mxu0 %v299
    %320 = vmatprep.subr.mxu0 0.0
    %321 = vmatpush1.msra.mxu0 %v300
    %322 = vmatprep.subr.mxu0 0.0
    %323 = vmatpush1.msra.mxu0 %v301
    %324 = vmatprep.subr.mxu0 0.0
    %325 = vmatpush1.msra.mxu0 %v302
    %326 = vmatprep.subr.mxu0 0.0
    %327 = vmatpush1.msra.mxu0 %v303
    %328 = vmatprep.subr.mxu0 0.0
    %329 = vmatpush1.msra.mxu0 %v304
    %330 = vmatprep.subr.mxu0 0.0
    %331 = vmatpush1.msra.mxu0 %v305
    %332 = vmatprep.subr.mxu0 0.0
    %333 = vmatpush1.msra.mxu0 %v306
    %334 = vmatprep.subr.mxu0 0.0
    %335 = vmatpush1.msra.mxu0 %v307
    %336 = vmatprep.subr.mxu0 0.0
    %337 = vmatpush1.msra.mxu0 %v308
    %338 = vmatprep.subr.mxu0 0.0
    %339 = vmatpush1.msra.mxu0 %v309
    %340 = vmatprep.subr.mxu0 0.0
    %341 = vmatpush1.msra.mxu0 %v310
    %342 = vmatprep.subr.mxu0 0.0
    %343 = vmatpush1.msra.mxu0 %v311
    %344 = vmatprep.subr.mxu0 0.0
    %345 = vmatpush1.msra.mxu0 0.0
    %346 = vmatprep.subr.mxu0 0.0
    %347 = vmatpush1.msra.mxu0 0.0
    %348 = vmatprep.subr.mxu0 0.0
    %349 = vmatpush1.msra.mxu0 0.0
    %350 = vmatprep.subr.mxu0 0.0
    %351 = vmatpush1.msra.mxu0 0.0
    %352 = vmatprep.subr.mxu0 0.0
    %353 = vmatpush1.msra.mxu0 0.0
    %354 = vmatprep.subr.mxu0 0.0
    %355 = vmatpush1.msra.mxu0 0.0
    %356 = vmatprep.subr.mxu0 0.0
    %357 = vmatpush1.msra.mxu0 0.0
    %358 = vmatprep.subr.mxu0 0.0
    %359 = vmatpush1.msra.mxu0 0.0
    %360 = vmatprep.subr.mxu0 0.0
    %361 = vmatpush1.msra.mxu0 0.0
    %362 = vmatprep.subr.mxu0 0.0
    %363 = vmatpush1.msra.mxu0 0.0
    %364 = vmatprep.subr.mxu0 0.0
    %365 = vmatpush1.msra.mxu0 0.0
    %366 = vmatprep.subr.mxu0 0.0
    %367 = vmatpush1.msra.mxu0 0.0
    %368 = vmatprep.subr.mxu0 0.0
    %369 = vmatpush1.msra.mxu0 0.0
    %370 = vmatprep.subr.mxu0 0.0
    %371 = vmatpush1.msra.mxu0 0.0
    %372 = vmatprep.subr.mxu0 0.0
    %373 = vmatpush1.msra.mxu0 0.0
    %374 = vmatprep.subr.mxu0 0.0
    %375 = vmatpush1.msra.mxu0 0.0
    %376 = vmatprep.mubr.f32.mxu0 0.0
    %377 = vmatmul.mubr.f32.gmra.mrb[0].mxu0 %v118
    %v378 = vpop.f32.mrb[0].mxu0
    %v379 = vadd.f32 0.0, %v378
    %v380 = vpop.f32.mrb[0].mxu0
    %381 = vdwg.mxu0
    %382 = vst.msk [vmem:[#allocation2 + $0x10] sm:$0xff] %vm205, %v379
    %s383 = scalar_lea.vmem %s3, 384
    %v384 = vld [vmem:[%s383] sm:$0xff]
    %v385 = vld [vmem:[%s383 + $0x8] sm:$0xff]
    %v386 = vld [vmem:[%s383 + $0x10] sm:$0xff]
    %v387 = vld [vmem:[%s383 + $0x18] sm:$0xff]
    %v388 = vld [vmem:[%s383 + $0x20] sm:$0xff]
    %v389 = vld [vmem:[%s383 + $0x28] sm:$0xff]
    %v390 = vld [vmem:[%s383 + $0x30] sm:$0xff]
    %v391 = vld [vmem:[%s383 + $0x38] sm:$0xff]
    %v392 = vld [vmem:[%s383 + $0x40] sm:$0xff]
    %v393 = vld [vmem:[%s383 + $0x48] sm:$0xff]
    %v394 = vld [vmem:[%s383 + $0x50] sm:$0xff]
    %v395 = vld [vmem:[%s383 + $0x58] sm:$0xff]
    %v396 = vld [vmem:[%s383 + $0x60] sm:$0xff]
    %v397 = vld [vmem:[%s383 + $0x68] sm:$0xff]
    %v398 = vld [vmem:[%s383 + $0x70] sm:$0xff]
    %v399 = vld [vmem:[%s383 + $0x78] sm:$0xff]
    %400 = vmatprep.subr.mxu0 0.0
    %401 = vmatpush1.msra.mxu0 %v384
    %402 = vmatprep.subr.mxu0 0.0
    %403 = vmatpush1.msra.mxu0 %v385
    %404 = vmatprep.subr.mxu0 0.0
    %405 = vmatpush1.msra.mxu0 %v386
    %406 = vmatprep.subr.mxu0 0.0
    %407 = vmatpush1.msra.mxu0 %v387
    %408 = vmatprep.subr.mxu0 0.0
    %409 = vmatpush1.msra.mxu0 %v388
    %410 = vmatprep.subr.mxu0 0.0
    %411 = vmatpush1.msra.mxu0 %v389
    %412 = vmatprep.subr.mxu0 0.0
    %413 = vmatpush1.msra.mxu0 %v390
    %414 = vmatprep.subr.mxu0 0.0
    %415 = vmatpush1.msra.mxu0 %v391
    %416 = vmatprep.subr.mxu0 0.0
    %417 = vmatpush1.msra.mxu0 %v392
    %418 = vmatprep.subr.mxu0 0.0
    %419 = vmatpush1.msra.mxu0 %v393
    %420 = vmatprep.subr.mxu0 0.0
    %421 = vmatpush1.msra.mxu0 %v394
    %422 = vmatprep.subr.mxu0 0.0
    %423 = vmatpush1.msra.mxu0 %v395
    %424 = vmatprep.subr.mxu0 0.0
    %425 = vmatpush1.msra.mxu0 %v396
    %426 = vmatprep.subr.mxu0 0.0
    %427 = vmatpush1.msra.mxu0 %v397
    %428 = vmatprep.subr.mxu0 0.0
    %429 = vmatpush1.msra.mxu0 %v398
    %430 = vmatprep.subr.mxu0 0.0
    %431 = vmatpush1.msra.mxu0 %v399
    %432 = vmatprep.subr.mxu0 0.0
    %433 = vmatpush1.msra.mxu0 0.0
    %434 = vmatprep.subr.mxu0 0.0
    %435 = vmatpush1.msra.mxu0 0.0
    %436 = vmatprep.subr.mxu0 0.0
    %437 = vmatpush1.msra.mxu0 0.0
    %438 = vmatprep.subr.mxu0 0.0
    %439 = vmatpush1.msra.mxu0 0.0
    %440 = vmatprep.subr.mxu0 0.0
    %441 = vmatpush1.msra.mxu0 0.0
    %442 = vmatprep.subr.mxu0 0.0
    %443 = vmatpush1.msra.mxu0 0.0
    %444 = vmatprep.subr.mxu0 0.0
    %445 = vmatpush1.msra.mxu0 0.0
    %446 = vmatprep.subr.mxu0 0.0
    %447 = vmatpush1.msra.mxu0 0.0
    %448 = vmatprep.subr.mxu0 0.0
    %449 = vmatpush1.msra.mxu0 0.0
    %450 = vmatprep.subr.mxu0 0.0
    %451 = vmatpush1.msra.mxu0 0.0
    %452 = vmatprep.subr.mxu0 0.0
    %453 = vmatpush1.msra.mxu0 0.0
    %454 = vmatprep.subr.mxu0 0.0
    %455 = vmatpush1.msra.mxu0 0.0
    %456 = vmatprep.subr.mxu0 0.0
    %457 = vmatpush1.msra.mxu0 0.0
    %458 = vmatprep.subr.mxu0 0.0
    %459 = vmatpush1.msra.mxu0 0.0
    %460 = vmatprep.subr.mxu0 0.0
    %461 = vmatpush1.msra.mxu0 0.0
    %462 = vmatprep.subr.mxu0 0.0
    %463 = vmatpush1.msra.mxu0 0.0
    %464 = vmatprep.mubr.f32.mxu0 0.0
    %465 = vmatmul.mubr.f32.gmra.mrb[0].mxu0 %v118
    %v466 = vpop.f32.mrb[0].mxu0
    %v467 = vadd.f32 0.0, %v466
    %v468 = vpop.f32.mrb[0].mxu0
    %469 = vdwg.mxu0
    %470 = vst.msk [vmem:[#allocation2 + $0x18] sm:$0xff] %vm205, %v467
    %s471 = scalar_lea.vmem %s3, 512
    %v472 = vld [vmem:[%s471] sm:$0xff]
    %v473 = vld [vmem:[%s471 + $0x8] sm:$0xff]
    %v474 = vld [vmem:[%s471 + $0x10] sm:$0xff]
    %v475 = vld [vmem:[%s471 + $0x18] sm:$0xff]
    %v476 = vld [vmem:[%s471 + $0x20] sm:$0xff]
    %v477 = vld [vmem:[%s471 + $0x28] sm:$0xff]
    %v478 = vld [vmem:[%s471 + $0x30] sm:$0xff]
    %v479 = vld [vmem:[%s471 + $0x38] sm:$0xff]
    %v480 = vld [vmem:[%s471 + $0x40] sm:$0xff]
    %v481 = vld [vmem:[%s471 + $0x48] sm:$0xff]
    %v482 = vld [vmem:[%s471 + $0x50] sm:$0xff]
    %v483 = vld [vmem:[%s471 + $0x58] sm:$0xff]
    %v484 = vld [vmem:[%s471 + $0x60] sm:$0xff]
    %v485 = vld [vmem:[%s471 + $0x68] sm:$0xff]
    %v486 = vld [vmem:[%s471 + $0x70] sm:$0xff]
    %v487 = vld [vmem:[%s471 + $0x78] sm:$0xff]
    %488 = vmatprep.subr.mxu0 0.0
    %489 = vmatpush1.msra.mxu0 %v472
    %490 = vmatprep.subr.mxu0 0.0
    %491 = vmatpush1.msra.mxu0 %v473
    %492 = vmatprep.subr.mxu0 0.0
    %493 = vmatpush1.msra.mxu0 %v474
    %494 = vmatprep.subr.mxu0 0.0
    %495 = vmatpush1.msra.mxu0 %v475
    %496 = vmatprep.subr.mxu0 0.0
    %497 = vmatpush1.msra.mxu0 %v476
    %498 = vmatprep.subr.mxu0 0.0
    %499 = vmatpush1.msra.mxu0 %v477
    %500 = vmatprep.subr.mxu0 0.0
    %501 = vmatpush1.msra.mxu0 %v478
    %502 = vmatprep.subr.mxu0 0.0
    %503 = vmatpush1.msra.mxu0 %v479
    %504 = vmatprep.subr.mxu0 0.0
    %505 = vmatpush1.msra.mxu0 %v480
    %506 = vmatprep.subr.mxu0 0.0
    %507 = vmatpush1.msra.mxu0 %v481
    %508 = vmatprep.subr.mxu0 0.0
    %509 = vmatpush1.msra.mxu0 %v482
    %510 = vmatprep.subr.mxu0 0.0
    %511 = vmatpush1.msra.mxu0 %v483
    %512 = vmatprep.subr.mxu0 0.0
    %513 = vmatpush1.msra.mxu0 %v484
    %514 = vmatprep.subr.mxu0 0.0
    %515 = vmatpush1.msra.mxu0 %v485
    %516 = vmatprep.subr.mxu0 0.0
    %517 = vmatpush1.msra.mxu0 %v486
    %518 = vmatprep.subr.mxu0 0.0
    %519 = vmatpush1.msra.mxu0 %v487
    %520 = vmatprep.subr.mxu0 0.0
    %521 = vmatpush1.msra.mxu0 0.0
    %522 = vmatprep.subr.mxu0 0.0
    %523 = vmatpush1.msra.mxu0 0.0
    %524 = vmatprep.subr.mxu0 0.0
    %525 = vmatpush1.msra.mxu0 0.0
    %526 = vmatprep.subr.mxu0 0.0
    %527 = vmatpush1.msra.mxu0 0.0
    %528 = vmatprep.subr.mxu0 0.0
    %529 = vmatpush1.msra.mxu0 0.0
    %530 = vmatprep.subr.mxu0 0.0
    %531 = vmatpush1.msra.mxu0 0.0
    %532 = vmatprep.subr.mxu0 0.0
    %533 = vmatpush1.msra.mxu0 0.0
    %534 = vmatprep.subr.mxu0 0.0
    %535 = vmatpush1.msra.mxu0 0.0
    %536 = vmatprep.subr.mxu0 0.0
    %537 = vmatpush1.msra.mxu0 0.0
    %538 = vmatprep.subr.mxu0 0.0
    %539 = vmatpush1.msra.mxu0 0.0
    %540 = vmatprep.subr.mxu0 0.0
    %541 = vmatpush1.msra.mxu0 0.0
    %542 = vmatprep.subr.mxu0 0.0
    %543 = vmatpush1.msra.mxu0 0.0
    %544 = vmatprep.subr.mxu0 0.0
    %545 = vmatpush1.msra.mxu0 0.0
    %546 = vmatprep.subr.mxu0 0.0
    %547 = vmatpush1.msra.mxu0 0.0
    %548 = vmatprep.subr.mxu0 0.0
    %549 = vmatpush1.msra.mxu0 0.0
    %550 = vmatprep.subr.mxu0 0.0
    %551 = vmatpush1.msra.mxu0 0.0
    %552 = vmatprep.mubr.f32.mxu0 0.0
    %553 = vmatmul.mubr.f32.gmra.mrb[0].mxu0 %v118
    %v554 = vpop.f32.mrb[0].mxu0
    %v555 = vadd.f32 0.0, %v554
    %v556 = vpop.f32.mrb[0].mxu0
    %557 = vdwg.mxu0
    %558 = vst.msk [vmem:[#allocation2 + $0x20] sm:$0xff] %vm205, %v555
    %s559 = scalar_lea.vmem %s3, 640
    %v560 = vld [vmem:[%s559] sm:$0xff]
    %v561 = vld [vmem:[%s559 + $0x8] sm:$0xff]
    %v562 = vld [vmem:[%s559 + $0x10] sm:$0xff]
    %v563 = vld [vmem:[%s559 + $0x18] sm:$0xff]
    %v564 = vld [vmem:[%s559 + $0x20] sm:$0xff]
    %v565 = vld [vmem:[%s559 + $0x28] sm:$0xff]
    %v566 = vld [vmem:[%s559 + $0x30] sm:$0xff]
    %v567 = vld [vmem:[%s559 + $0x38] sm:$0xff]
    %v568 = vld [vmem:[%s559 + $0x40] sm:$0xff]
    %v569 = vld [vmem:[%s559 + $0x48] sm:$0xff]
    %v570 = vld [vmem:[%s559 + $0x50] sm:$0xff]
    %v571 = vld [vmem:[%s559 + $0x58] sm:$0xff]
    %v572 = vld [vmem:[%s559 + $0x60] sm:$0xff]
    %v573 = vld [vmem:[%s559 + $0x68] sm:$0xff]
    %v574 = vld [vmem:[%s559 + $0x70] sm:$0xff]
    %v575 = vld [vmem:[%s559 + $0x78] sm:$0xff]
    %576 = vmatprep.subr.mxu0 0.0
    %577 = vmatpush1.msra.mxu0 %v560
    %578 = vmatprep.subr.mxu0 0.0
    %579 = vmatpush1.msra.mxu0 %v561
    %580 = vmatprep.subr.mxu0 0.0
    %581 = vmatpush1.msra.mxu0 %v562
    %582 = vmatprep.subr.mxu0 0.0
    %583 = vmatpush1.msra.mxu0 %v563
    %584 = vmatprep.subr.mxu0 0.0
    %585 = vmatpush1.msra.mxu0 %v564
    %586 = vmatprep.subr.mxu0 0.0
    %587 = vmatpush1.msra.mxu0 %v565
    %588 = vmatprep.subr.mxu0 0.0
    %589 = vmatpush1.msra.mxu0 %v566
    %590 = vmatprep.subr.mxu0 0.0
    %591 = vmatpush1.msra.mxu0 %v567
    %592 = vmatprep.subr.mxu0 0.0
    %593 = vmatpush1.msra.mxu0 %v568
    %594 = vmatprep.subr.mxu0 0.0
    %595 = vmatpush1.msra.mxu0 %v569
    %596 = vmatprep.subr.mxu0 0.0
    %597 = vmatpush1.msra.mxu0 %v570
    %598 = vmatprep.subr.mxu0 0.0
    %599 = vmatpush1.msra.mxu0 %v571
    %600 = vmatprep.subr.mxu0 0.0
    %601 = vmatpush1.msra.mxu0 %v572
    %602 = vmatprep.subr.mxu0 0.0
    %603 = vmatpush1.msra.mxu0 %v573
    %604 = vmatprep.subr.mxu0 0.0
    %605 = vmatpush1.msra.mxu0 %v574
    %606 = vmatprep.subr.mxu0 0.0
    %607 = vmatpush1.msra.mxu0 %v575
    %608 = vmatprep.subr.mxu0 0.0
    %609 = vmatpush1.msra.mxu0 0.0
    %610 = vmatprep.subr.mxu0 0.0
    %611 = vmatpush1.msra.mxu0 0.0
    %612 = vmatprep.subr.mxu0 0.0
    %613 = vmatpush1.msra.mxu0 0.0
    %614 = vmatprep.subr.mxu0 0.0
    %615 = vmatpush1.msra.mxu0 0.0
    %616 = vmatprep.subr.mxu0 0.0
    %617 = vmatpush1.msra.mxu0 0.0
    %618 = vmatprep.subr.mxu0 0.0
    %619 = vmatpush1.msra.mxu0 0.0
    %620 = vmatprep.subr.mxu0 0.0
    %621 = vmatpush1.msra.mxu0 0.0
    %622 = vmatprep.subr.mxu0 0.0
    %623 = vmatpush1.msra.mxu0 0.0
    %624 = vmatprep.subr.mxu0 0.0
    %625 = vmatpush1.msra.mxu0 0.0
    %626 = vmatprep.subr.mxu0 0.0
    %627 = vmatpush1.msra.mxu0 0.0
    %628 = vmatprep.subr.mxu0 0.0
    %629 = vmatpush1.msra.mxu0 0.0
    %630 = vmatprep.subr.mxu0 0.0
    %631 = vmatpush1.msra.mxu0 0.0
    %632 = vmatprep.subr.mxu0 0.0
    %633 = vmatpush1.msra.mxu0 0.0
    %634 = vmatprep.subr.mxu0 0.0
    %635 = vmatpush1.msra.mxu0 0.0
    %636 = vmatprep.subr.mxu0 0.0
    %637 = vmatpush1.msra.mxu0 0.0
    %638 = vmatprep.subr.mxu0 0.0
    %639 = vmatpush1.msra.mxu0 0.0
    %640 = vmatprep.mubr.f32.mxu0 0.0
    %641 = vmatmul.mubr.f32.gmra.mrb[0].mxu0 %v118
    %v642 = vpop.f32.mrb[0].mxu0
    %v643 = vadd.f32 0.0, %v642
    %v644 = vpop.f32.mrb[0].mxu0
    %645 = vdwg.mxu0
    %646 = vst.msk [vmem:[#allocation2 + $0x28] sm:$0xff] %vm205, %v643
    %s647 = scalar_lea.vmem %s3, 768
    %v648 = vld [vmem:[%s647] sm:$0xff]
    %v649 = vld [vmem:[%s647 + $0x8] sm:$0xff]
    %v650 = vld [vmem:[%s647 + $0x10] sm:$0xff]
    %v651 = vld [vmem:[%s647 + $0x18] sm:$0xff]
    %v652 = vld [vmem:[%s647 + $0x20] sm:$0xff]
    %v653 = vld [vmem:[%s647 + $0x28] sm:$0xff]
    %v654 = vld [vmem:[%s647 + $0x30] sm:$0xff]
    %v655 = vld [vmem:[%s647 + $0x38] sm:$0xff]
    %v656 = vld [vmem:[%s647 + $0x40] sm:$0xff]
    %v657 = vld [vmem:[%s647 + $0x48] sm:$0xff]
    %v658 = vld [vmem:[%s647 + $0x50] sm:$0xff]
    %v659 = vld [vmem:[%s647 + $0x58] sm:$0xff]
    %v660 = vld [vmem:[%s647 + $0x60] sm:$0xff]
    %v661 = vld [vmem:[%s647 + $0x68] sm:$0xff]
    %v662 = vld [vmem:[%s647 + $0x70] sm:$0xff]
    %v663 = vld [vmem:[%s647 + $0x78] sm:$0xff]
    %664 = vmatprep.subr.mxu0 0.0
    %665 = vmatpush1.msra.mxu0 %v648
    %666 = vmatprep.subr.mxu0 0.0
    %667 = vmatpush1.msra.mxu0 %v649
    %668 = vmatprep.subr.mxu0 0.0
    %669 = vmatpush1.msra.mxu0 %v650
    %670 = vmatprep.subr.mxu0 0.0
    %671 = vmatpush1.msra.mxu0 %v651
    %672 = vmatprep.subr.mxu0 0.0
    %673 = vmatpush1.msra.mxu0 %v652
    %674 = vmatprep.subr.mxu0 0.0
    %675 = vmatpush1.msra.mxu0 %v653
    %676 = vmatprep.subr.mxu0 0.0
    %677 = vmatpush1.msra.mxu0 %v654
    %678 = vmatprep.subr.mxu0 0.0
    %679 = vmatpush1.msra.mxu0 %v655
    %680 = vmatprep.subr.mxu0 0.0
    %681 = vmatpush1.msra.mxu0 %v656
    %682 = vmatprep.subr.mxu0 0.0
    %683 = vmatpush1.msra.mxu0 %v657
    %684 = vmatprep.subr.mxu0 0.0
    %685 = vmatpush1.msra.mxu0 %v658
    %686 = vmatprep.subr.mxu0 0.0
    %687 = vmatpush1.msra.mxu0 %v659
    %688 = vmatprep.subr.mxu0 0.0
    %689 = vmatpush1.msra.mxu0 %v660
    %690 = vmatprep.subr.mxu0 0.0
    %691 = vmatpush1.msra.mxu0 %v661
    %692 = vmatprep.subr.mxu0 0.0
    %693 = vmatpush1.msra.mxu0 %v662
    %694 = vmatprep.subr.mxu0 0.0
    %695 = vmatpush1.msra.mxu0 %v663
    %696 = vmatprep.subr.mxu0 0.0
    %697 = vmatpush1.msra.mxu0 0.0
    %698 = vmatprep.subr.mxu0 0.0
    %699 = vmatpush1.msra.mxu0 0.0
    %700 = vmatprep.subr.mxu0 0.0
    %701 = vmatpush1.msra.mxu0 0.0
    %702 = vmatprep.subr.mxu0 0.0
    %703 = vmatpush1.msra.mxu0 0.0
    %704 = vmatprep.subr.mxu0 0.0
    %705 = vmatpush1.msra.mxu0 0.0
    %706 = vmatprep.subr.mxu0 0.0
    %707 = vmatpush1.msra.mxu0 0.0
    %708 = vmatprep.subr.mxu0 0.0
    %709 = vmatpush1.msra.mxu0 0.0
    %710 = vmatprep.subr.mxu0 0.0
    %711 = vmatpush1.msra.mxu0 0.0
    %712 = vmatprep.subr.mxu0 0.0
    %713 = vmatpush1.msra.mxu0 0.0
    %714 = vmatprep.subr.mxu0 0.0
    %715 = vmatpush1.msra.mxu0 0.0
    %716 = vmatprep.subr.mxu0 0.0
    %717 = vmatpush1.msra.mxu0 0.0
    %718 = vmatprep.subr.mxu0 0.0
    %719 = vmatpush1.msra.mxu0 0.0
    %720 = vmatprep.subr.mxu0 0.0
    %721 = vmatpush1.msra.mxu0 0.0
    %722 = vmatprep.subr.mxu0 0.0
    %723 = vmatpush1.msra.mxu0 0.0
    %724 = vmatprep.subr.mxu0 0.0
    %725 = vmatpush1.msra.mxu0 0.0
    %726 = vmatprep.subr.mxu0 0.0
    %727 = vmatpush1.msra.mxu0 0.0
    %728 = vmatprep.mubr.f32.mxu0 0.0
    %729 = vmatmul.mubr.f32.gmra.mrb[0].mxu0 %v118
    %v730 = vpop.f32.mrb[0].mxu0
    %v731 = vadd.f32 0.0, %v730
    %v732 = vpop.f32.mrb[0].mxu0
    %733 = vdwg.mxu0
    %734 = vst.msk [vmem:[#allocation2 + $0x30] sm:$0xff] %vm205, %v731
    %s735 = scalar_lea.vmem %s3, 896
    %v736 = vld [vmem:[%s735] sm:$0xff]
    %v737 = vld [vmem:[%s735 + $0x8] sm:$0xff]
    %v738 = vld [vmem:[%s735 + $0x10] sm:$0xff]
    %v739 = vld [vmem:[%s735 + $0x18] sm:$0xff]
    %v740 = vld [vmem:[%s735 + $0x20] sm:$0xff]
    %v741 = vld [vmem:[%s735 + $0x28] sm:$0xff]
    %v742 = vld [vmem:[%s735 + $0x30] sm:$0xff]
    %v743 = vld [vmem:[%s735 + $0x38] sm:$0xff]
    %v744 = vld [vmem:[%s735 + $0x40] sm:$0xff]
    %v745 = vld [vmem:[%s735 + $0x48] sm:$0xff]
    %v746 = vld [vmem:[%s735 + $0x50] sm:$0xff]
    %v747 = vld [vmem:[%s735 + $0x58] sm:$0xff]
    %v748 = vld [vmem:[%s735 + $0x60] sm:$0xff]
    %v749 = vld [vmem:[%s735 + $0x68] sm:$0xff]
    %v750 = vld [vmem:[%s735 + $0x70] sm:$0xff]
    %v751 = vld [vmem:[%s735 + $0x78] sm:$0xff]
    %752 = vmatprep.subr.mxu0 0.0
    %753 = vmatpush1.msra.mxu0 %v736
    %754 = vmatprep.subr.mxu0 0.0
    %755 = vmatpush1.msra.mxu0 %v737
    %756 = vmatprep.subr.mxu0 0.0
    %757 = vmatpush1.msra.mxu0 %v738
    %758 = vmatprep.subr.mxu0 0.0
    %759 = vmatpush1.msra.mxu0 %v739
    %760 = vmatprep.subr.mxu0 0.0
    %761 = vmatpush1.msra.mxu0 %v740
    %762 = vmatprep.subr.mxu0 0.0
    %763 = vmatpush1.msra.mxu0 %v741
    %764 = vmatprep.subr.mxu0 0.0
    %765 = vmatpush1.msra.mxu0 %v742
    %766 = vmatprep.subr.mxu0 0.0
    %767 = vmatpush1.msra.mxu0 %v743
    %768 = vmatprep.subr.mxu0 0.0
    %769 = vmatpush1.msra.mxu0 %v744
    %770 = vmatprep.subr.mxu0 0.0
    %771 = vmatpush1.msra.mxu0 %v745
    %772 = vmatprep.subr.mxu0 0.0
    %773 = vmatpush1.msra.mxu0 %v746
    %774 = vmatprep.subr.mxu0 0.0
    %775 = vmatpush1.msra.mxu0 %v747
    %776 = vmatprep.subr.mxu0 0.0
    %777 = vmatpush1.msra.mxu0 %v748
    %778 = vmatprep.subr.mxu0 0.0
    %779 = vmatpush1.msra.mxu0 %v749
    %780 = vmatprep.subr.mxu0 0.0
    %781 = vmatpush1.msra.mxu0 %v750
    %782 = vmatprep.subr.mxu0 0.0
    %783 = vmatpush1.msra.mxu0 %v751
    %784 = vmatprep.subr.mxu0 0.0
    %785 = vmatpush1.msra.mxu0 0.0
    %786 = vmatprep.subr.mxu0 0.0
    %787 = vmatpush1.msra.mxu0 0.0
    %788 = vmatprep.subr.mxu0 0.0
    %789 = vmatpush1.msra.mxu0 0.0
    %790 = vmatprep.subr.mxu0 0.0
    %791 = vmatpush1.msra.mxu0 0.0
    %792 = vmatprep.subr.mxu0 0.0
    %793 = vmatpush1.msra.mxu0 0.0
    %794 = vmatprep.subr.mxu0 0.0
    %795 = vmatpush1.msra.mxu0 0.0
    %796 = vmatprep.subr.mxu0 0.0
    %797 = vmatpush1.msra.mxu0 0.0
    %798 = vmatprep.subr.mxu0 0.0
    %799 = vmatpush1.msra.mxu0 0.0
    %800 = vmatprep.subr.mxu0 0.0
    %801 = vmatpush1.msra.mxu0 0.0
    %802 = vmatprep.subr.mxu0 0.0
    %803 = vmatpush1.msra.mxu0 0.0
    %804 = vmatprep.subr.mxu0 0.0
    %805 = vmatpush1.msra.mxu0 0.0
    %806 = vmatprep.subr.mxu0 0.0
    %807 = vmatpush1.msra.mxu0 0.0
    %808 = vmatprep.subr.mxu0 0.0
    %809 = vmatpush1.msra.mxu0 0.0
    %810 = vmatprep.subr.mxu0 0.0
    %811 = vmatpush1.msra.mxu0 0.0
    %812 = vmatprep.subr.mxu0 0.0
    %813 = vmatpush1.msra.mxu0 0.0
    %814 = vmatprep.subr.mxu0 0.0
    %815 = vmatpush1.msra.mxu0 0.0
    %816 = vmatprep.mubr.f32.mxu0 0.0
    %817 = vmatmul.mubr.f32.gmra.mrb[0].mxu0 %v118
    %v818 = vpop.f32.mrb[0].mxu0
    %v819 = vadd.f32 0.0, %v818
    %v820 = vpop.f32.mrb[0].mxu0
    %821 = vdwg.mxu0
    %822 = vst.msk [vmem:[#allocation2 + $0x38] sm:$0xff] %vm205, %v819
    %s823 = scalar_lea.vmem %s3, 1024
    %v824 = vld [vmem:[%s823] sm:$0xff]
    %v825 = vld [vmem:[%s823 + $0x8] sm:$0xff]
    %v826 = vld [vmem:[%s823 + $0x10] sm:$0xff]
    %v827 = vld [vmem:[%s823 + $0x18] sm:$0xff]
    %v828 = vld [vmem:[%s823 + $0x20] sm:$0xff]
    %v829 = vld [vmem:[%s823 + $0x28] sm:$0xff]
    %v830 = vld [vmem:[%s823 + $0x30] sm:$0xff]
    %v831 = vld [vmem:[%s823 + $0x38] sm:$0xff]
    %v832 = vld [vmem:[%s823 + $0x40] sm:$0xff]
    %v833 = vld [vmem:[%s823 + $0x48] sm:$0xff]
    %v834 = vld [vmem:[%s823 + $0x50] sm:$0xff]
    %v835 = vld [vmem:[%s823 + $0x58] sm:$0xff]
    %v836 = vld [vmem:[%s823 + $0x60] sm:$0xff]
    %v837 = vld [vmem:[%s823 + $0x68] sm:$0xff]
    %v838 = vld [vmem:[%s823 + $0x70] sm:$0xff]
    %v839 = vld [vmem:[%s823 + $0x78] sm:$0xff]
    %840 = vmatprep.subr.mxu0 0.0
    %841 = vmatpush1.msra.mxu0 %v824
    %842 = vmatprep.subr.mxu0 0.0
    %843 = vmatpush1.msra.mxu0 %v825
    %844 = vmatprep.subr.mxu0 0.0
    %845 = vmatpush1.msra.mxu0 %v826
    %846 = vmatprep.subr.mxu0 0.0
    %847 = vmatpush1.msra.mxu0 %v827
    %848 = vmatprep.subr.mxu0 0.0
    %849 = vmatpush1.msra.mxu0 %v828
    %850 = vmatprep.subr.mxu0 0.0
    %851 = vmatpush1.msra.mxu0 %v829
    %852 = vmatprep.subr.mxu0 0.0
    %853 = vmatpush1.msra.mxu0 %v830
    %854 = vmatprep.subr.mxu0 0.0
    %855 = vmatpush1.msra.mxu0 %v831
    %856 = vmatprep.subr.mxu0 0.0
    %857 = vmatpush1.msra.mxu0 %v832
    %858 = vmatprep.subr.mxu0 0.0
    %859 = vmatpush1.msra.mxu0 %v833
    %860 = vmatprep.subr.mxu0 0.0
    %861 = vmatpush1.msra.mxu0 %v834
    %862 = vmatprep.subr.mxu0 0.0
    %863 = vmatpush1.msra.mxu0 %v835
    %864 = vmatprep.subr.mxu0 0.0
    %865 = vmatpush1.msra.mxu0 %v836
    %866 = vmatprep.subr.mxu0 0.0
    %867 = vmatpush1.msra.mxu0 %v837
    %868 = vmatprep.subr.mxu0 0.0
    %869 = vmatpush1.msra.mxu0 %v838
    %870 = vmatprep.subr.mxu0 0.0
    %871 = vmatpush1.msra.mxu0 %v839
    %872 = vmatprep.subr.mxu0 0.0
    %873 = vmatpush1.msra.mxu0 0.0
    %874 = vmatprep.subr.mxu0 0.0
    %875 = vmatpush1.msra.mxu0 0.0
    %876 = vmatprep.subr.mxu0 0.0
    %877 = vmatpush1.msra.mxu0 0.0
    %878 = vmatprep.subr.mxu0 0.0
    %879 = vmatpush1.msra.mxu0 0.0
    %880 = vmatprep.subr.mxu0 0.0
    %881 = vmatpush1.msra.mxu0 0.0
    %882 = vmatprep.subr.mxu0 0.0
    %883 = vmatpush1.msra.mxu0 0.0
    %884 = vmatprep.subr.mxu0 0.0
    %885 = vmatpush1.msra.mxu0 0.0
    %886 = vmatprep.subr.mxu0 0.0
    %887 = vmatpush1.msra.mxu0 0.0
    %888 = vmatprep.subr.mxu0 0.0
    %889 = vmatpush1.msra.mxu0 0.0
    %890 = vmatprep.subr.mxu0 0.0
    %891 = vmatpush1.msra.mxu0 0.0
    %892 = vmatprep.subr.mxu0 0.0
    %893 = vmatpush1.msra.mxu0 0.0
    %894 = vmatprep.subr.mxu0 0.0
    %895 = vmatpush1.msra.mxu0 0.0
    %896 = vmatprep.subr.mxu0 0.0
    %897 = vmatpush1.msra.mxu0 0.0
    %898 = vmatprep.subr.mxu0 0.0
    %899 = vmatpush1.msra.mxu0 0.0
    %900 = vmatprep.subr.mxu0 0.0
    %901 = vmatpush1.msra.mxu0 0.0
    %902 = vmatprep.subr.mxu0 0.0
    %903 = vmatpush1.msra.mxu0 0.0
    %904 = vmatprep.mubr.f32.mxu0 0.0
    %905 = vmatmul.mubr.f32.gmra.mrb[0].mxu0 %v118
    %v906 = vpop.f32.mrb[0].mxu0
    %v907 = vadd.f32 0.0, %v906
    %v908 = vpop.f32.mrb[0].mxu0
    %909 = vdwg.mxu0
    %910 = vst.msk [vmem:[#allocation2 + $0x40] sm:$0xff] %vm205, %v907
    %s911 = scalar_lea.vmem %s3, 1152
    %v912 = vld [vmem:[%s911] sm:$0xff]
    %v913 = vld [vmem:[%s911 + $0x8] sm:$0xff]
    %v914 = vld [vmem:[%s911 + $0x10] sm:$0xff]
    %v915 = vld [vmem:[%s911 + $0x18] sm:$0xff]
    %v916 = vld [vmem:[%s911 + $0x20] sm:$0xff]
    %v917 = vld [vmem:[%s911 + $0x28] sm:$0xff]
    %v918 = vld [vmem:[%s911 + $0x30] sm:$0xff]
    %v919 = vld [vmem:[%s911 + $0x38] sm:$0xff]
    %v920 = vld [vmem:[%s911 + $0x40] sm:$0xff]
    %v921 = vld [vmem:[%s911 + $0x48] sm:$0xff]
    %v922 = vld [vmem:[%s911 + $0x50] sm:$0xff]
    %v923 = vld [vmem:[%s911 + $0x58] sm:$0xff]
    %v924 = vld [vmem:[%s911 + $0x60] sm:$0xff]
    %v925 = vld [vmem:[%s911 + $0x68] sm:$0xff]
    %v926 = vld [vmem:[%s911 + $0x70] sm:$0xff]
    %v927 = vld [vmem:[%s911 + $0x78] sm:$0xff]
    %928 = vmatprep.subr.mxu0 0.0
    %929 = vmatpush1.msra.mxu0 %v912
    %930 = vmatprep.subr.mxu0 0.0
    %931 = vmatpush1.msra.mxu0 %v913
    %932 = vmatprep.subr.mxu0 0.0
    %933 = vmatpush1.msra.mxu0 %v914
    %934 = vmatprep.subr.mxu0 0.0
    %935 = vmatpush1.msra.mxu0 %v915
    %936 = vmatprep.subr.mxu0 0.0
    %937 = vmatpush1.msra.mxu0 %v916
    %938 = vmatprep.subr.mxu0 0.0
    %939 = vmatpush1.msra.mxu0 %v917
    %940 = vmatprep.subr.mxu0 0.0
    %941 = vmatpush1.msra.mxu0 %v918
    %942 = vmatprep.subr.mxu0 0.0
    %943 = vmatpush1.msra.mxu0 %v919
    %944 = vmatprep.subr.mxu0 0.0
    %945 = vmatpush1.msra.mxu0 %v920
    %946 = vmatprep.subr.mxu0 0.0
    %947 = vmatpush1.msra.mxu0 %v921
    %948 = vmatprep.subr.mxu0 0.0
    %949 = vmatpush1.msra.mxu0 %v922
    %950 = vmatprep.subr.mxu0 0.0
    %951 = vmatpush1.msra.mxu0 %v923
    %952 = vmatprep.subr.mxu0 0.0
    %953 = vmatpush1.msra.mxu0 %v924
    %954 = vmatprep.subr.mxu0 0.0
    %955 = vmatpush1.msra.mxu0 %v925
    %956 = vmatprep.subr.mxu0 0.0
    %957 = vmatpush1.msra.mxu0 %v926
    %958 = vmatprep.subr.mxu0 0.0
    %959 = vmatpush1.msra.mxu0 %v927
    %960 = vmatprep.subr.mxu0 0.0
    %961 = vmatpush1.msra.mxu0 0.0
    %962 = vmatprep.subr.mxu0 0.0
    %963 = vmatpush1.msra.mxu0 0.0
    %964 = vmatprep.subr.mxu0 0.0
    %965 = vmatpush1.msra.mxu0 0.0
    %966 = vmatprep.subr.mxu0 0.0
    %967 = vmatpush1.msra.mxu0 0.0
    %968 = vmatprep.subr.mxu0 0.0
    %969 = vmatpush1.msra.mxu0 0.0
    %970 = vmatprep.subr.mxu0 0.0
    %971 = vmatpush1.msra.mxu0 0.0
    %972 = vmatprep.subr.mxu0 0.0
    %973 = vmatpush1.msra.mxu0 0.0
    %974 = vmatprep.subr.mxu0 0.0
    %975 = vmatpush1.msra.mxu0 0.0
    %976 = vmatprep.subr.mxu0 0.0
    %977 = vmatpush1.msra.mxu0 0.0
    %978 = vmatprep.subr.mxu0 0.0
    %979 = vmatpush1.msra.mxu0 0.0
    %980 = vmatprep.subr.mxu0 0.0
    %981 = vmatpush1.msra.mxu0 0.0
    %982 = vmatprep.subr.mxu0 0.0
    %983 = vmatpush1.msra.mxu0 0.0
    %984 = vmatprep.subr.mxu0 0.0
    %985 = vmatpush1.msra.mxu0 0.0
    %986 = vmatprep.subr.mxu0 0.0
    %987 = vmatpush1.msra.mxu0 0.0
    %988 = vmatprep.subr.mxu0 0.0
    %989 = vmatpush1.msra.mxu0 0.0
    %990 = vmatprep.subr.mxu0 0.0
    %991 = vmatpush1.msra.mxu0 0.0
    %992 = vmatprep.mubr.f32.mxu0 0.0
    %993 = vmatmul.mubr.f32.gmra.mrb[0].mxu0 %v118
    %v994 = vpop.f32.mrb[0].mxu0
    %v995 = vadd.f32 0.0, %v994
    %v996 = vpop.f32.mrb[0].mxu0
    %997 = vdwg.mxu0
    %998 = vst.msk [vmem:[#allocation2 + $0x48] sm:$0xff] %vm205, %v995
    %s999 = scalar_lea.vmem %s3, 1280
    %v1000 = vld [vmem:[%s999] sm:$0xff]
    %v1001 = vld [vmem:[%s999 + $0x8] sm:$0xff]
    %v1002 = vld [vmem:[%s999 + $0x10] sm:$0xff]
    %v1003 = vld [vmem:[%s999 + $0x18] sm:$0xff]
    %v1004 = vld [vmem:[%s999 + $0x20] sm:$0xff]
    %v1005 = vld [vmem:[%s999 + $0x28] sm:$0xff]
    %v1006 = vld [vmem:[%s999 + $0x30] sm:$0xff]
    %v1007 = vld [vmem:[%s999 + $0x38] sm:$0xff]
    %v1008 = vld [vmem:[%s999 + $0x40] sm:$0xff]
    %v1009 = vld [vmem:[%s999 + $0x48] sm:$0xff]
    %v1010 = vld [vmem:[%s999 + $0x50] sm:$0xff]
    %v1011 = vld [vmem:[%s999 + $0x58] sm:$0xff]
    %v1012 = vld [vmem:[%s999 + $0x60] sm:$0xff]
    %v1013 = vld [vmem:[%s999 + $0x68] sm:$0xff]
    %v1014 = vld [vmem:[%s999 + $0x70] sm:$0xff]
    %v1015 = vld [vmem:[%s999 + $0x78] sm:$0xff]
    %1016 = vmatprep.subr.mxu0 0.0
    %1017 = vmatpush1.msra.mxu0 %v1000
    %1018 = vmatprep.subr.mxu0 0.0
    %1019 = vmatpush1.msra.mxu0 %v1001
    %1020 = vmatprep.subr.mxu0 0.0
    %1021 = vmatpush1.msra.mxu0 %v1002
    %1022 = vmatprep.subr.mxu0 0.0
    %1023 = vmatpush1.msra.mxu0 %v1003
    %1024 = vmatprep.subr.mxu0 0.0
    %1025 = vmatpush1.msra.mxu0 %v1004
    %1026 = vmatprep.subr.mxu0 0.0
    %1027 = vmatpush1.msra.mxu0 %v1005
    %1028 = vmatprep.subr.mxu0 0.0
    %1029 = vmatpush1.msra.mxu0 %v1006
    %1030 = vmatprep.subr.mxu0 0.0
    %1031 = vmatpush1.msra.mxu0 %v1007
    %1032 = vmatprep.subr.mxu0 0.0
    %1033 = vmatpush1.msra.mxu0 %v1008
    %1034 = vmatprep.subr.mxu0 0.0
    %1035 = vmatpush1.msra.mxu0 %v1009
    %1036 = vmatprep.subr.mxu0 0.0
    %1037 = vmatpush1.msra.mxu0 %v1010
    %1038 = vmatprep.subr.mxu0 0.0
    %1039 = vmatpush1.msra.mxu0 %v1011
    %1040 = vmatprep.subr.mxu0 0.0
    %1041 = vmatpush1.msra.mxu0 %v1012
    %1042 = vmatprep.subr.mxu0 0.0
    %1043 = vmatpush1.msra.mxu0 %v1013
    %1044 = vmatprep.subr.mxu0 0.0
    %1045 = vmatpush1.msra.mxu0 %v1014
    %1046 = vmatprep.subr.mxu0 0.0
    %1047 = vmatpush1.msra.mxu0 %v1015
    %1048 = vmatprep.subr.mxu0 0.0
    %1049 = vmatpush1.msra.mxu0 0.0
    %1050 = vmatprep.subr.mxu0 0.0
    %1051 = vmatpush1.msra.mxu0 0.0
    %1052 = vmatprep.subr.mxu0 0.0
    %1053 = vmatpush1.msra.mxu0 0.0
    %1054 = vmatprep.subr.mxu0 0.0
    %1055 = vmatpush1.msra.mxu0 0.0
    %1056 = vmatprep.subr.mxu0 0.0
    %1057 = vmatpush1.msra.mxu0 0.0
    %1058 = vmatprep.subr.mxu0 0.0
    %1059 = vmatpush1.msra.mxu0 0.0
    %1060 = vmatprep.subr.mxu0 0.0
    %1061 = vmatpush1.msra.mxu0 0.0
    %1062 = vmatprep.subr.mxu0 0.0
    %1063 = vmatpush1.msra.mxu0 0.0
    %1064 = vmatprep.subr.mxu0 0.0
    %1065 = vmatpush1.msra.mxu0 0.0
    %1066 = vmatprep.subr.mxu0 0.0
    %1067 = vmatpush1.msra.mxu0 0.0
    %1068 = vmatprep.subr.mxu0 0.0
    %1069 = vmatpush1.msra.mxu0 0.0
    %1070 = vmatprep.subr.mxu0 0.0
    %1071 = vmatpush1.msra.mxu0 0.0
    %1072 = vmatprep.subr.mxu0 0.0
    %1073 = vmatpush1.msra.mxu0 0.0
    %1074 = vmatprep.subr.mxu0 0.0
    %1075 = vmatpush1.msra.mxu0 0.0
    %1076 = vmatprep.subr.mxu0 0.0
    %1077 = vmatpush1.msra.mxu0 0.0
    %1078 = vmatprep.subr.mxu0 0.0
    %1079 = vmatpush1.msra.mxu0 0.0
    %1080 = vmatprep.mubr.f32.mxu0 0.0
    %1081 = vmatmul.mubr.f32.gmra.mrb[0].mxu0 %v118
    %v1082 = vpop.f32.mrb[0].mxu0
    %v1083 = vadd.f32 0.0, %v1082
    %v1084 = vpop.f32.mrb[0].mxu0
    %1085 = vdwg.mxu0
    %1086 = vst.msk [vmem:[#allocation2 + $0x50] sm:$0xff] %vm205, %v1083
    %s1087 = scalar_lea.vmem %s3, 1408
    %v1088 = vld [vmem:[%s1087] sm:$0xff]
    %v1089 = vld [vmem:[%s1087 + $0x8] sm:$0xff]
    %v1090 = vld [vmem:[%s1087 + $0x10] sm:$0xff]
    %v1091 = vld [vmem:[%s1087 + $0x18] sm:$0xff]
    %v1092 = vld [vmem:[%s1087 + $0x20] sm:$0xff]
    %v1093 = vld [vmem:[%s1087 + $0x28] sm:$0xff]
    %v1094 = vld [vmem:[%s1087 + $0x30] sm:$0xff]
    %v1095 = vld [vmem:[%s1087 + $0x38] sm:$0xff]
    %v1096 = vld [vmem:[%s1087 + $0x40] sm:$0xff]
    %v1097 = vld [vmem:[%s1087 + $0x48] sm:$0xff]
    %v1098 = vld [vmem:[%s1087 + $0x50] sm:$0xff]
    %v1099 = vld [vmem:[%s1087 + $0x58] sm:$0xff]
    %v1100 = vld [vmem:[%s1087 + $0x60] sm:$0xff]
    %v1101 = vld [vmem:[%s1087 + $0x68] sm:$0xff]
    %v1102 = vld [vmem:[%s1087 + $0x70] sm:$0xff]
    %v1103 = vld [vmem:[%s1087 + $0x78] sm:$0xff]
    %1104 = vmatprep.subr.mxu0 0.0
    %1105 = vmatpush1.msra.mxu0 %v1088
    %1106 = vmatprep.subr.mxu0 0.0
    %1107 = vmatpush1.msra.mxu0 %v1089
    %1108 = vmatprep.subr.mxu0 0.0
    %1109 = vmatpush1.msra.mxu0 %v1090
    %1110 = vmatprep.subr.mxu0 0.0
    %1111 = vmatpush1.msra.mxu0 %v1091
    %1112 = vmatprep.subr.mxu0 0.0
    %1113 = vmatpush1.msra.mxu0 %v1092
    %1114 = vmatprep.subr.mxu0 0.0
    %1115 = vmatpush1.msra.mxu0 %v1093
    %1116 = vmatprep.subr.mxu0 0.0
    %1117 = vmatpush1.msra.mxu0 %v1094
    %1118 = vmatprep.subr.mxu0 0.0
    %1119 = vmatpush1.msra.mxu0 %v1095
    %1120 = vmatprep.subr.mxu0 0.0
    %1121 = vmatpush1.msra.mxu0 %v1096
    %1122 = vmatprep.subr.mxu0 0.0
    %1123 = vmatpush1.msra.mxu0 %v1097
    %1124 = vmatprep.subr.mxu0 0.0
    %1125 = vmatpush1.msra.mxu0 %v1098
    %1126 = vmatprep.subr.mxu0 0.0
    %1127 = vmatpush1.msra.mxu0 %v1099
    %1128 = vmatprep.subr.mxu0 0.0
    %1129 = vmatpush1.msra.mxu0 %v1100
    %1130 = vmatprep.subr.mxu0 0.0
    %1131 = vmatpush1.msra.mxu0 %v1101
    %1132 = vmatprep.subr.mxu0 0.0
    %1133 = vmatpush1.msra.mxu0 %v1102
    %1134 = vmatprep.subr.mxu0 0.0
    %1135 = vmatpush1.msra.mxu0 %v1103
    %1136 = vmatprep.subr.mxu0 0.0
    %1137 = vmatpush1.msra.mxu0 0.0
    %1138 = vmatprep.subr.mxu0 0.0
    %1139 = vmatpush1.msra.mxu0 0.0
    %1140 = vmatprep.subr.mxu0 0.0
    %1141 = vmatpush1.msra.mxu0 0.0
    %1142 = vmatprep.subr.mxu0 0.0
    %1143 = vmatpush1.msra.mxu0 0.0
    %1144 = vmatprep.subr.mxu0 0.0
    %1145 = vmatpush1.msra.mxu0 0.0
    %1146 = vmatprep.subr.mxu0 0.0
    %1147 = vmatpush1.msra.mxu0 0.0
    %1148 = vmatprep.subr.mxu0 0.0
    %1149 = vmatpush1.msra.mxu0 0.0
    %1150 = vmatprep.subr.mxu0 0.0
    %1151 = vmatpush1.msra.mxu0 0.0
    %1152 = vmatprep.subr.mxu0 0.0
    %1153 = vmatpush1.msra.mxu0 0.0
    %1154 = vmatprep.subr.mxu0 0.0
    %1155 = vmatpush1.msra.mxu0 0.0
    %1156 = vmatprep.subr.mxu0 0.0
    %1157 = vmatpush1.msra.mxu0 0.0
    %1158 = vmatprep.subr.mxu0 0.0
    %1159 = vmatpush1.msra.mxu0 0.0
    %1160 = vmatprep.subr.mxu0 0.0
    %1161 = vmatpush1.msra.mxu0 0.0
    %1162 = vmatprep.subr.mxu0 0.0
    %1163 = vmatpush1.msra.mxu0 0.0
    %1164 = vmatprep.subr.mxu0 0.0
    %1165 = vmatpush1.msra.mxu0 0.0
    %1166 = vmatprep.subr.mxu0 0.0
    %1167 = vmatpush1.msra.mxu0 0.0
    %1168 = vmatprep.mubr.f32.mxu0 0.0
    %1169 = vmatmul.mubr.f32.gmra.mrb[0].mxu0 %v118
    %v1170 = vpop.f32.mrb[0].mxu0
    %v1171 = vadd.f32 0.0, %v1170
    %v1172 = vpop.f32.mrb[0].mxu0
    %1173 = vdwg.mxu0
    %1174 = vst.msk [vmem:[#allocation2 + $0x58] sm:$0xff] %vm205, %v1171
    %s1175 = scalar_lea.vmem %s3, 1536
    %v1176 = vld [vmem:[%s1175] sm:$0xff]
    %v1177 = vld [vmem:[%s1175 + $0x8] sm:$0xff]
    %v1178 = vld [vmem:[%s1175 + $0x10] sm:$0xff]
    %v1179 = vld [vmem:[%s1175 + $0x18] sm:$0xff]
    %v1180 = vld [vmem:[%s1175 + $0x20] sm:$0xff]
    %v1181 = vld [vmem:[%s1175 + $0x28] sm:$0xff]
    %v1182 = vld [vmem:[%s1175 + $0x30] sm:$0xff]
    %v1183 = vld [vmem:[%s1175 + $0x38] sm:$0xff]
    %v1184 = vld [vmem:[%s1175 + $0x40] sm:$0xff]
    %v1185 = vld [vmem:[%s1175 + $0x48] sm:$0xff]
    %v1186 = vld [vmem:[%s1175 + $0x50] sm:$0xff]
    %v1187 = vld [vmem:[%s1175 + $0x58] sm:$0xff]
    %v1188 = vld [vmem:[%s1175 + $0x60] sm:$0xff]
    %v1189 = vld [vmem:[%s1175 + $0x68] sm:$0xff]
    %v1190 = vld [vmem:[%s1175 + $0x70] sm:$0xff]
    %v1191 = vld [vmem:[%s1175 + $0x78] sm:$0xff]
    %1192 = vmatprep.subr.mxu0 0.0
    %1193 = vmatpush1.msra.mxu0 %v1176
    %1194 = vmatprep.subr.mxu0 0.0
    %1195 = vmatpush1.msra.mxu0 %v1177
    %1196 = vmatprep.subr.mxu0 0.0
    %1197 = vmatpush1.msra.mxu0 %v1178
    %1198 = vmatprep.subr.mxu0 0.0
    %1199 = vmatpush1.msra.mxu0 %v1179
    %1200 = vmatprep.subr.mxu0 0.0
    %1201 = vmatpush1.msra.mxu0 %v1180
    %1202 = vmatprep.subr.mxu0 0.0
    %1203 = vmatpush1.msra.mxu0 %v1181
    %1204 = vmatprep.subr.mxu0 0.0
    %1205 = vmatpush1.msra.mxu0 %v1182
    %1206 = vmatprep.subr.mxu0 0.0
    %1207 = vmatpush1.msra.mxu0 %v1183
    %1208 = vmatprep.subr.mxu0 0.0
    %1209 = vmatpush1.msra.mxu0 %v1184
    %1210 = vmatprep.subr.mxu0 0.0
    %1211 = vmatpush1.msra.mxu0 %v1185
    %1212 = vmatprep.subr.mxu0 0.0
    %1213 = vmatpush1.msra.mxu0 %v1186
    %1214 = vmatprep.subr.mxu0 0.0
    %1215 = vmatpush1.msra.mxu0 %v1187
    %1216 = vmatprep.subr.mxu0 0.0
    %1217 = vmatpush1.msra.mxu0 %v1188
    %1218 = vmatprep.subr.mxu0 0.0
    %1219 = vmatpush1.msra.mxu0 %v1189
    %1220 = vmatprep.subr.mxu0 0.0
    %1221 = vmatpush1.msra.mxu0 %v1190
    %1222 = vmatprep.subr.mxu0 0.0
    %1223 = vmatpush1.msra.mxu0 %v1191
    %1224 = vmatprep.subr.mxu0 0.0
    %1225 = vmatpush1.msra.mxu0 0.0
    %1226 = vmatprep.subr.mxu0 0.0
    %1227 = vmatpush1.msra.mxu0 0.0
    %1228 = vmatprep.subr.mxu0 0.0
    %1229 = vmatpush1.msra.mxu0 0.0
    %1230 = vmatprep.subr.mxu0 0.0
    %1231 = vmatpush1.msra.mxu0 0.0
    %1232 = vmatprep.subr.mxu0 0.0
    %1233 = vmatpush1.msra.mxu0 0.0
    %1234 = vmatprep.subr.mxu0 0.0
    %1235 = vmatpush1.msra.mxu0 0.0
    %1236 = vmatprep.subr.mxu0 0.0
    %1237 = vmatpush1.msra.mxu0 0.0
    %1238 = vmatprep.subr.mxu0 0.0
    %1239 = vmatpush1.msra.mxu0 0.0
    %1240 = vmatprep.subr.mxu0 0.0
    %1241 = vmatpush1.msra.mxu0 0.0
    %1242 = vmatprep.subr.mxu0 0.0
    %1243 = vmatpush1.msra.mxu0 0.0
    %1244 = vmatprep.subr.mxu0 0.0
    %1245 = vmatpush1.msra.mxu0 0.0
    %1246 = vmatprep.subr.mxu0 0.0
    %1247 = vmatpush1.msra.mxu0 0.0
    %1248 = vmatprep.subr.mxu0 0.0
    %1249 = vmatpush1.msra.mxu0 0.0
    %1250 = vmatprep.subr.mxu0 0.0
    %1251 = vmatpush1.msra.mxu0 0.0
    %1252 = vmatprep.subr.mxu0 0.0
    %1253 = vmatpush1.msra.mxu0 0.0
    %1254 = vmatprep.subr.mxu0 0.0
    %1255 = vmatpush1.msra.mxu0 0.0
    %1256 = vmatprep.mubr.f32.mxu0 0.0
    %1257 = vmatmul.mubr.f32.gmra.mrb[0].mxu0 %v118
    %v1258 = vpop.f32.mrb[0].mxu0
    %v1259 = vadd.f32 0.0, %v1258
    %v1260 = vpop.f32.mrb[0].mxu0
    %1261 = vdwg.mxu0
    %1262 = vst.msk [vmem:[#allocation2 + $0x60] sm:$0xff] %vm205, %v1259
    %s1263 = scalar_lea.vmem %s3, 1664
    %v1264 = vld [vmem:[%s1263] sm:$0xff]
    %v1265 = vld [vmem:[%s1263 + $0x8] sm:$0xff]
    %v1266 = vld [vmem:[%s1263 + $0x10] sm:$0xff]
    %v1267 = vld [vmem:[%s1263 + $0x18] sm:$0xff]
    %v1268 = vld [vmem:[%s1263 + $0x20] sm:$0xff]
    %v1269 = vld [vmem:[%s1263 + $0x28] sm:$0xff]
    %v1270 = vld [vmem:[%s1263 + $0x30] sm:$0xff]
    %v1271 = vld [vmem:[%s1263 + $0x38] sm:$0xff]
    %v1272 = vld [vmem:[%s1263 + $0x40] sm:$0xff]
    %v1273 = vld [vmem:[%s1263 + $0x48] sm:$0xff]
    %v1274 = vld [vmem:[%s1263 + $0x50] sm:$0xff]
    %v1275 = vld [vmem:[%s1263 + $0x58] sm:$0xff]
    %v1276 = vld [vmem:[%s1263 + $0x60] sm:$0xff]
    %v1277 = vld [vmem:[%s1263 + $0x68] sm:$0xff]
    %v1278 = vld [vmem:[%s1263 + $0x70] sm:$0xff]
    %v1279 = vld [vmem:[%s1263 + $0x78] sm:$0xff]
    %1280 = vmatprep.subr.mxu0 0.0
    %1281 = vmatpush1.msra.mxu0 %v1264
    %1282 = vmatprep.subr.mxu0 0.0
    %1283 = vmatpush1.msra.mxu0 %v1265
    %1284 = vmatprep.subr.mxu0 0.0
    %1285 = vmatpush1.msra.mxu0 %v1266
    %1286 = vmatprep.subr.mxu0 0.0
    %1287 = vmatpush1.msra.mxu0 %v1267
    %1288 = vmatprep.subr.mxu0 0.0
    %1289 = vmatpush1.msra.mxu0 %v1268
    %1290 = vmatprep.subr.mxu0 0.0
    %1291 = vmatpush1.msra.mxu0 %v1269
    %1292 = vmatprep.subr.mxu0 0.0
    %1293 = vmatpush1.msra.mxu0 %v1270
    %1294 = vmatprep.subr.mxu0 0.0
    %1295 = vmatpush1.msra.mxu0 %v1271
    %1296 = vmatprep.subr.mxu0 0.0
    %1297 = vmatpush1.msra.mxu0 %v1272
    %1298 = vmatprep.subr.mxu0 0.0
    %1299 = vmatpush1.msra.mxu0 %v1273
    %1300 = vmatprep.subr.mxu0 0.0
    %1301 = vmatpush1.msra.mxu0 %v1274
    %1302 = vmatprep.subr.mxu0 0.0
    %1303 = vmatpush1.msra.mxu0 %v1275
    %1304 = vmatprep.subr.mxu0 0.0
    %1305 = vmatpush1.msra.mxu0 %v1276
    %1306 = vmatprep.subr.mxu0 0.0
    %1307 = vmatpush1.msra.mxu0 %v1277
    %1308 = vmatprep.subr.mxu0 0.0
    %1309 = vmatpush1.msra.mxu0 %v1278
    %1310 = vmatprep.subr.mxu0 0.0
    %1311 = vmatpush1.msra.mxu0 %v1279
    %1312 = vmatprep.subr.mxu0 0.0
    %1313 = vmatpush1.msra.mxu0 0.0
    %1314 = vmatprep.subr.mxu0 0.0
    %1315 = vmatpush1.msra.mxu0 0.0
    %1316 = vmatprep.subr.mxu0 0.0
    %1317 = vmatpush1.msra.mxu0 0.0
    %1318 = vmatprep.subr.mxu0 0.0
    %1319 = vmatpush1.msra.mxu0 0.0
    %1320 = vmatprep.subr.mxu0 0.0
    %1321 = vmatpush1.msra.mxu0 0.0
    %1322 = vmatprep.subr.mxu0 0.0
    %1323 = vmatpush1.msra.mxu0 0.0
    %1324 = vmatprep.subr.mxu0 0.0
    %1325 = vmatpush1.msra.mxu0 0.0
    %1326 = vmatprep.subr.mxu0 0.0
    %1327 = vmatpush1.msra.mxu0 0.0
    %1328 = vmatprep.subr.mxu0 0.0
    %1329 = vmatpush1.msra.mxu0 0.0
    %1330 = vmatprep.subr.mxu0 0.0
    %1331 = vmatpush1.msra.mxu0 0.0
    %1332 = vmatprep.subr.mxu0 0.0
    %1333 = vmatpush1.msra.mxu0 0.0
    %1334 = vmatprep.subr.mxu0 0.0
    %1335 = vmatpush1.msra.mxu0 0.0
    %1336 = vmatprep.subr.mxu0 0.0
    %1337 = vmatpush1.msra.mxu0 0.0
    %1338 = vmatprep.subr.mxu0 0.0
    %1339 = vmatpush1.msra.mxu0 0.0
    %1340 = vmatprep.subr.mxu0 0.0
    %1341 = vmatpush1.msra.mxu0 0.0
    %1342 = vmatprep.subr.mxu0 0.0
    %1343 = vmatpush1.msra.mxu0 0.0
    %1344 = vmatprep.mubr.f32.mxu0 0.0
    %1345 = vmatmul.mubr.f32.gmra.mrb[0].mxu0 %v118
    %v1346 = vpop.f32.mrb[0].mxu0
    %v1347 = vadd.f32 0.0, %v1346
    %v1348 = vpop.f32.mrb[0].mxu0
    %1349 = vdwg.mxu0
    %1350 = vst.msk [vmem:[#allocation2 + $0x68] sm:$0xff] %vm205, %v1347
    %s1351 = scalar_lea.vmem %s3, 1792
    %v1352 = vld [vmem:[%s1351] sm:$0xff]
    %v1353 = vld [vmem:[%s1351 + $0x8] sm:$0xff]
    %v1354 = vld [vmem:[%s1351 + $0x10] sm:$0xff]
    %v1355 = vld [vmem:[%s1351 + $0x18] sm:$0xff]
    %v1356 = vld [vmem:[%s1351 + $0x20] sm:$0xff]
    %v1357 = vld [vmem:[%s1351 + $0x28] sm:$0xff]
    %v1358 = vld [vmem:[%s1351 + $0x30] sm:$0xff]
    %v1359 = vld [vmem:[%s1351 + $0x38] sm:$0xff]
    %v1360 = vld [vmem:[%s1351 + $0x40] sm:$0xff]
    %v1361 = vld [vmem:[%s1351 + $0x48] sm:$0xff]
    %v1362 = vld [vmem:[%s1351 + $0x50] sm:$0xff]
    %v1363 = vld [vmem:[%s1351 + $0x58] sm:$0xff]
    %v1364 = vld [vmem:[%s1351 + $0x60] sm:$0xff]
    %v1365 = vld [vmem:[%s1351 + $0x68] sm:$0xff]
    %v1366 = vld [vmem:[%s1351 + $0x70] sm:$0xff]
    %v1367 = vld [vmem:[%s1351 + $0x78] sm:$0xff]
    %1368 = vmatprep.subr.mxu0 0.0
    %1369 = vmatpush1.msra.mxu0 %v1352
    %1370 = vmatprep.subr.mxu0 0.0
    %1371 = vmatpush1.msra.mxu0 %v1353
    %1372 = vmatprep.subr.mxu0 0.0
    %1373 = vmatpush1.msra.mxu0 %v1354
    %1374 = vmatprep.subr.mxu0 0.0
    %1375 = vmatpush1.msra.mxu0 %v1355
    %1376 = vmatprep.subr.mxu0 0.0
    %1377 = vmatpush1.msra.mxu0 %v1356
    %1378 = vmatprep.subr.mxu0 0.0
    %1379 = vmatpush1.msra.mxu0 %v1357
    %1380 = vmatprep.subr.mxu0 0.0
    %1381 = vmatpush1.msra.mxu0 %v1358
    %1382 = vmatprep.subr.mxu0 0.0
    %1383 = vmatpush1.msra.mxu0 %v1359
    %1384 = vmatprep.subr.mxu0 0.0
    %1385 = vmatpush1.msra.mxu0 %v1360
    %1386 = vmatprep.subr.mxu0 0.0
    %1387 = vmatpush1.msra.mxu0 %v1361
    %1388 = vmatprep.subr.mxu0 0.0
    %1389 = vmatpush1.msra.mxu0 %v1362
    %1390 = vmatprep.subr.mxu0 0.0
    %1391 = vmatpush1.msra.mxu0 %v1363
    %1392 = vmatprep.subr.mxu0 0.0
    %1393 = vmatpush1.msra.mxu0 %v1364
    %1394 = vmatprep.subr.mxu0 0.0
    %1395 = vmatpush1.msra.mxu0 %v1365
    %1396 = vmatprep.subr.mxu0 0.0
    %1397 = vmatpush1.msra.mxu0 %v1366
    %1398 = vmatprep.subr.mxu0 0.0
    %1399 = vmatpush1.msra.mxu0 %v1367
    %1400 = vmatprep.subr.mxu0 0.0
    %1401 = vmatpush1.msra.mxu0 0.0
    %1402 = vmatprep.subr.mxu0 0.0
    %1403 = vmatpush1.msra.mxu0 0.0
    %1404 = vmatprep.subr.mxu0 0.0
    %1405 = vmatpush1.msra.mxu0 0.0
    %1406 = vmatprep.subr.mxu0 0.0
    %1407 = vmatpush1.msra.mxu0 0.0
    %1408 = vmatprep.subr.mxu0 0.0
    %1409 = vmatpush1.msra.mxu0 0.0
    %1410 = vmatprep.subr.mxu0 0.0
    %1411 = vmatpush1.msra.mxu0 0.0
    %1412 = vmatprep.subr.mxu0 0.0
    %1413 = vmatpush1.msra.mxu0 0.0
    %1414 = vmatprep.subr.mxu0 0.0
    %1415 = vmatpush1.msra.mxu0 0.0
    %1416 = vmatprep.subr.mxu0 0.0
    %1417 = vmatpush1.msra.mxu0 0.0
    %1418 = vmatprep.subr.mxu0 0.0
    %1419 = vmatpush1.msra.mxu0 0.0
    %1420 = vmatprep.subr.mxu0 0.0
    %1421 = vmatpush1.msra.mxu0 0.0
    %1422 = vmatprep.subr.mxu0 0.0
    %1423 = vmatpush1.msra.mxu0 0.0
    %1424 = vmatprep.subr.mxu0 0.0
    %1425 = vmatpush1.msra.mxu0 0.0
    %1426 = vmatprep.subr.mxu0 0.0
    %1427 = vmatpush1.msra.mxu0 0.0
    %1428 = vmatprep.subr.mxu0 0.0
    %1429 = vmatpush1.msra.mxu0 0.0
    %1430 = vmatprep.subr.mxu0 0.0
    %1431 = vmatpush1.msra.mxu0 0.0
    %1432 = vmatprep.mubr.f32.mxu0 0.0
    %1433 = vmatmul.mubr.f32.gmra.mrb[0].mxu0 %v118
    %v1434 = vpop.f32.mrb[0].mxu0
    %v1435 = vadd.f32 0.0, %v1434
    %v1436 = vpop.f32.mrb[0].mxu0
    %1437 = vdwg.mxu0
    %1438 = vst.msk [vmem:[#allocation2 + $0x70] sm:$0xff] %vm205, %v1435
    %s1439 = scalar_lea.vmem %s3, 1920
    %v1440 = vld [vmem:[%s1439] sm:$0xff]
    %v1441 = vld [vmem:[%s1439 + $0x8] sm:$0xff]
    %v1442 = vld [vmem:[%s1439 + $0x10] sm:$0xff]
    %v1443 = vld [vmem:[%s1439 + $0x18] sm:$0xff]
    %v1444 = vld [vmem:[%s1439 + $0x20] sm:$0xff]
    %v1445 = vld [vmem:[%s1439 + $0x28] sm:$0xff]
    %v1446 = vld [vmem:[%s1439 + $0x30] sm:$0xff]
    %v1447 = vld [vmem:[%s1439 + $0x38] sm:$0xff]
    %v1448 = vld [vmem:[%s1439 + $0x40] sm:$0xff]
    %v1449 = vld [vmem:[%s1439 + $0x48] sm:$0xff]
    %v1450 = vld [vmem:[%s1439 + $0x50] sm:$0xff]
    %v1451 = vld [vmem:[%s1439 + $0x58] sm:$0xff]
    %v1452 = vld [vmem:[%s1439 + $0x60] sm:$0xff]
    %v1453 = vld [vmem:[%s1439 + $0x68] sm:$0xff]
    %v1454 = vld [vmem:[%s1439 + $0x70] sm:$0xff]
    %v1455 = vld [vmem:[%s1439 + $0x78] sm:$0xff]
    %1456 = vmatprep.subr.mxu0 0.0
    %1457 = vmatpush1.msra.mxu0 %v1440
    %1458 = vmatprep.subr.mxu0 0.0
    %1459 = vmatpush1.msra.mxu0 %v1441
    %1460 = vmatprep.subr.mxu0 0.0
    %1461 = vmatpush1.msra.mxu0 %v1442
    %1462 = vmatprep.subr.mxu0 0.0
    %1463 = vmatpush1.msra.mxu0 %v1443
    %1464 = vmatprep.subr.mxu0 0.0
    %1465 = vmatpush1.msra.mxu0 %v1444
    %1466 = vmatprep.subr.mxu0 0.0
    %1467 = vmatpush1.msra.mxu0 %v1445
    %1468 = vmatprep.subr.mxu0 0.0
    %1469 = vmatpush1.msra.mxu0 %v1446
    %1470 = vmatprep.subr.mxu0 0.0
    %1471 = vmatpush1.msra.mxu0 %v1447
    %1472 = vmatprep.subr.mxu0 0.0
    %1473 = vmatpush1.msra.mxu0 %v1448
    %1474 = vmatprep.subr.mxu0 0.0
    %1475 = vmatpush1.msra.mxu0 %v1449
    %1476 = vmatprep.subr.mxu0 0.0
    %1477 = vmatpush1.msra.mxu0 %v1450
    %1478 = vmatprep.subr.mxu0 0.0
    %1479 = vmatpush1.msra.mxu0 %v1451
    %1480 = vmatprep.subr.mxu0 0.0
    %1481 = vmatpush1.msra.mxu0 %v1452
    %1482 = vmatprep.subr.mxu0 0.0
    %1483 = vmatpush1.msra.mxu0 %v1453
    %1484 = vmatprep.subr.mxu0 0.0
    %1485 = vmatpush1.msra.mxu0 %v1454
    %1486 = vmatprep.subr.mxu0 0.0
    %1487 = vmatpush1.msra.mxu0 %v1455
    %1488 = vmatprep.subr.mxu0 0.0
    %1489 = vmatpush1.msra.mxu0 0.0
    %1490 = vmatprep.subr.mxu0 0.0
    %1491 = vmatpush1.msra.mxu0 0.0
    %1492 = vmatprep.subr.mxu0 0.0
    %1493 = vmatpush1.msra.mxu0 0.0
    %1494 = vmatprep.subr.mxu0 0.0
    %1495 = vmatpush1.msra.mxu0 0.0
    %1496 = vmatprep.subr.mxu0 0.0
    %1497 = vmatpush1.msra.mxu0 0.0
    %1498 = vmatprep.subr.mxu0 0.0
    %1499 = vmatpush1.msra.mxu0 0.0
    %1500 = vmatprep.subr.mxu0 0.0
    %1501 = vmatpush1.msra.mxu0 0.0
    %1502 = vmatprep.subr.mxu0 0.0
    %1503 = vmatpush1.msra.mxu0 0.0
    %1504 = vmatprep.subr.mxu0 0.0
    %1505 = vmatpush1.msra.mxu0 0.0
    %1506 = vmatprep.subr.mxu0 0.0
    %1507 = vmatpush1.msra.mxu0 0.0
    %1508 = vmatprep.subr.mxu0 0.0
    %1509 = vmatpush1.msra.mxu0 0.0
    %1510 = vmatprep.subr.mxu0 0.0
    %1511 = vmatpush1.msra.mxu0 0.0
    %1512 = vmatprep.subr.mxu0 0.0
    %1513 = vmatpush1.msra.mxu0 0.0
    %1514 = vmatprep.subr.mxu0 0.0
    %1515 = vmatpush1.msra.mxu0 0.0
    %1516 = vmatprep.subr.mxu0 0.0
    %1517 = vmatpush1.msra.mxu0 0.0
    %1518 = vmatprep.subr.mxu0 0.0
    %1519 = vmatpush1.msra.mxu0 0.0
    %1520 = vmatprep.mubr.f32.mxu0 0.0
    %1521 = vmatmul.mubr.f32.gmra.mrb[0].mxu0 %v118
    %v1522 = vpop.f32.mrb[0].mxu0
    %v1523 = vadd.f32 0.0, %v1522
    %v1524 = vpop.f32.mrb[0].mxu0
    %1525 = vdwg.mxu0
    %1526 = vst.msk [vmem:[#allocation2 + $0x78] sm:$0xff] %vm205, %v1523
    %v1527 = vld [vmem:[%s4] sm:$0xff]
    %v1528 = vld [vmem:[%s4 + $0x8] sm:$0xff]
    %v1529 = vld [vmem:[#allocation2] sm:$0xff]
    %v1530 = vld [vmem:[#allocation2 + $0x8] sm:$0xff]
    %v1531 = vld [vmem:[#allocation2 + $0x10] sm:$0xff]
    %v1532 = vld [vmem:[#allocation2 + $0x18] sm:$0xff]
    %v1533 = vld [vmem:[#allocation2 + $0x20] sm:$0xff]
    %v1534 = vld [vmem:[#allocation2 + $0x28] sm:$0xff]
    %v1535 = vld [vmem:[#allocation2 + $0x30] sm:$0xff]
    %v1536 = vld [vmem:[#allocation2 + $0x38] sm:$0xff]
    %v1537 = vld [vmem:[#allocation2 + $0x40] sm:$0xff]
    %v1538 = vld [vmem:[#allocation2 + $0x48] sm:$0xff]
    %v1539 = vld [vmem:[#allocation2 + $0x50] sm:$0xff]
    %v1540 = vld [vmem:[#allocation2 + $0x58] sm:$0xff]
    %v1541 = vld [vmem:[#allocation2 + $0x60] sm:$0xff]
    %v1542 = vld [vmem:[#allocation2 + $0x68] sm:$0xff]
    %v1543 = vld [vmem:[#allocation2 + $0x70] sm:$0xff]
    %v1544 = vld [vmem:[#allocation2 + $0x78] sm:$0xff]
    %1545 = vmatprep.subr.mxu0 0.0
    %1546 = vmatpush1.msra.mxu0 %v1529
    %1547 = vmatprep.subr.mxu0 0.0
    %1548 = vmatpush1.msra.mxu0 %v1530
    %1549 = vmatprep.subr.mxu0 0.0
    %1550 = vmatpush1.msra.mxu0 %v1531
    %1551 = vmatprep.subr.mxu0 0.0
    %1552 = vmatpush1.msra.mxu0 %v1532
    %1553 = vmatprep.subr.mxu0 0.0
    %1554 = vmatpush1.msra.mxu0 %v1533
    %1555 = vmatprep.subr.mxu0 0.0
    %1556 = vmatpush1.msra.mxu0 %v1534
    %1557 = vmatprep.subr.mxu0 0.0
    %1558 = vmatpush1.msra.mxu0 %v1535
    %1559 = vmatprep.subr.mxu0 0.0
    %1560 = vmatpush1.msra.mxu0 %v1536
    %1561 = vmatprep.subr.mxu0 0.0
    %1562 = vmatpush1.msra.mxu0 %v1537
    %1563 = vmatprep.subr.mxu0 0.0
    %1564 = vmatpush1.msra.mxu0 %v1538
    %1565 = vmatprep.subr.mxu0 0.0
    %1566 = vmatpush1.msra.mxu0 %v1539
    %1567 = vmatprep.subr.mxu0 0.0
    %1568 = vmatpush1.msra.mxu0 %v1540
    %1569 = vmatprep.subr.mxu0 0.0
    %1570 = vmatpush1.msra.mxu0 %v1541
    %1571 = vmatprep.subr.mxu0 0.0
    %1572 = vmatpush1.msra.mxu0 %v1542
    %1573 = vmatprep.subr.mxu0 0.0
    %1574 = vmatpush1.msra.mxu0 %v1543
    %1575 = vmatprep.subr.mxu0 0.0
    %1576 = vmatpush1.msra.mxu0 %v1544
    %1577 = vmatprep.subr.mxu0 0.0
    %1578 = vmatpush1.msra.mxu0 0.0
    %1579 = vmatprep.subr.mxu0 0.0
    %1580 = vmatpush1.msra.mxu0 0.0
    %1581 = vmatprep.subr.mxu0 0.0
    %1582 = vmatpush1.msra.mxu0 0.0
    %1583 = vmatprep.subr.mxu0 0.0
    %1584 = vmatpush1.msra.mxu0 0.0
    %1585 = vmatprep.subr.mxu0 0.0
    %1586 = vmatpush1.msra.mxu0 0.0
    %1587 = vmatprep.subr.mxu0 0.0
    %1588 = vmatpush1.msra.mxu0 0.0
    %1589 = vmatprep.subr.mxu0 0.0
    %1590 = vmatpush1.msra.mxu0 0.0
    %1591 = vmatprep.subr.mxu0 0.0
    %1592 = vmatpush1.msra.mxu0 0.0
    %1593 = vmatprep.subr.mxu0 0.0
    %1594 = vmatpush1.msra.mxu0 0.0
    %1595 = vmatprep.subr.mxu0 0.0
    %1596 = vmatpush1.msra.mxu0 0.0
    %1597 = vmatprep.subr.mxu0 0.0
    %1598 = vmatpush1.msra.mxu0 0.0
    %1599 = vmatprep.subr.mxu0 0.0
    %1600 = vmatpush1.msra.mxu0 0.0
    %1601 = vmatprep.subr.mxu0 0.0
    %1602 = vmatpush1.msra.mxu0 0.0
    %1603 = vmatprep.subr.mxu0 0.0
    %1604 = vmatpush1.msra.mxu0 0.0
    %1605 = vmatprep.subr.mxu0 0.0
    %1606 = vmatpush1.msra.mxu0 0.0
    %1607 = vmatprep.subr.mxu0 0.0
    %1608 = vmatpush1.msra.mxu0 0.0
    %1609 = vmatprep.mubr.f32.mxu0 0.0
    %1610 = vmatmul.mubr.f32.gmra.mrb[0].mxu0 %v1527
    %v1611 = vpop.f32.mrb[0].mxu0
    %v1612 = vadd.f32 0.0, %v1611
    %v1613 = vpop.f32.mrb[0].mxu0
    %1614 = vmatprep.mubr.f32.mxu0 0.0
    %1615 = vmatmul.mubr.f32.gmra.mrb[0].mxu0 %v1528
    %v1616 = vpop.f32.mrb[0].mxu0
    %v1617 = vadd.f32 0.0, %v1616
    %v1618 = vpop.f32.mrb[0].mxu0
    %1619 = vdwg.mxu0
    %v1620 = vsel %vm205, %v1612, 0.0
    %1621 = vadd.xlane.f32.xlu0 %v1620
    %v1622 = vpop.xlane.xlu0 %1621
    %v1623 = vsel %vm205, %v1617, 0.0
    %1624 = vadd.xlane.f32.xlu0 %v1623
    %v1625 = vpop.xlane.xlu0 %1624
    %v1626 = vrcp.pop 32.0
    %v1627 = vmul.f32 %v1622, %v1626
    %v1628 = vmul.f32 %v1625, %v1626
    %v1629 = vmul.f32 %v1612, %v1612
    %v1630 = vmul.f32 %v1617, %v1617
    %v1631 = vsel %vm205, %v1629, 0.0
    %1632 = vadd.xlane.f32.xlu0 %v1631
    %v1633 = vpop.xlane.xlu0 %1632
    %v1634 = vsel %vm205, %v1630, 0.0
    %1635 = vadd.xlane.f32.xlu0 %v1634
    %v1636 = vpop.xlane.xlu0 %1635
    %v1637 = vmul.f32 %v1633, %v1626
    %v1638 = vmul.f32 %v1636, %v1626
    %v1639 = vmul.f32 %v1627, %v1627
    %v1640 = vmul.f32 %v1628, %v1628
    %v1641 = vsub.f32 %v1637, %v1639
    %v1642 = vsub.f32 %v1638, %v1640
    %v1643 = vmax.f32 %v1641, 0.0
    %v1644 = vmax.f32 %v1642, 0.0
    %v1645 = vsub.f32 %v1612, %v1627
    %v1646 = vsub.f32 %v1617, %v1628
    %v1647 = vadd.f32 %v1643, 1e-05
    %v1648 = vadd.f32 %v1644, 1e-05
    %v1649 = vrsqrt.pop %v1647
    %v1650 = vrsqrt.pop %v1648
    %v1651 = vmul.f32 %v1645, %v1649
    %v1652 = vmul.f32 %v1646, %v1650
    %vm1653 = vcmp.gt.f32.partialorder %v1651, 0.0
    %vm1654 = vcmp.gt.f32.partialorder %v1652, 0.0
    %v1655 = vmul.f32 %v1651, 0.2
    %v1656 = vmul.f32 %v1652, 0.2
    %v1657 = vsel %vm1653, %v1651, %v1655
    %v1658 = vsel %vm1654, %v1652, %v1656
    %1659 = vst.msk [vmem:[#allocation5] sm:$0xff] %vm205, %v1657
    %1660 = vst.msk [vmem:[#allocation5 + $0x8] sm:$0xff] %vm205, %v1658
    %v1661 = vld [vmem:[%s5] sm:$0xff]
    %v1662 = vld [vmem:[%s5 + $0x8] sm:$0xff]
    %1664 = vset.pattern.permute.xlu0 0
    %1665 = vperm.xlu0 %1664, %v1661
    %v1666 = vpop.permute.xlu0 %1665
    %1669 = vset.pattern.permute.xlu0 0
    %1670 = vperm.xlu0 %1669, %v1662
    %v1671 = vpop.permute.xlu0 %1670
    %v1673 = vmul.f32 %v1657, %v1666
    %v1674 = vmul.f32 %v1658, %v1671
    %vm1675 = vcmask 15360
    %v1676 = vsel %vm1675, %v1673, 0.0
    %v1677 = vsel %vm1675, %v1674, 0.0
    %v1678 = vadd.f32 %v1676, %v1677
    %v1679 = vrot.slane %v1678, 4
    %v1680 = vadd.f32 %v1678, %v1679
    %v1681 = vrot.slane %v1680, 2
    %v1682 = vadd.f32 %v1680, %v1681
    %v1683 = vrot.slane %v1682, 1
    %v1684 = vadd.f32 %v1682, %v1683
    %v1685 = vadd.f32 %v1684, 0.0
    %1686 = vset.pattern.permute.xlu0 1
    %1687 = vperm.xlu0 %1686, %v1661
    %v1688 = vpop.permute.xlu0 %1687
    %1690 = vset.pattern.permute.xlu0 1
    %1691 = vperm.xlu0 %1690, %v1662
    %v1692 = vpop.permute.xlu0 %1691
    %v1694 = vmul.f32 %v1657, %v1688
    %v1695 = vmul.f32 %v1658, %v1692
    %vm1696 = vcmask 31760
    %v1697 = vsel %vm1696, %v1694, 0.0
    %v1698 = vsel %vm1696, %v1695, 0.0
    %v1699 = vadd.f32 %v1697, %v1698
    %v1700 = vrot.slane %v1699, 4
    %v1701 = vadd.f32 %v1699, %v1700
    %v1702 = vrot.slane %v1701, 2
    %v1703 = vadd.f32 %v1701, %v1702
    %v1704 = vrot.slane %v1703, 1
    %v1705 = vadd.f32 %v1703, %v1704
    %1707 = vrot.lane.b32.xlu0 %v1705, 126
    %v1708 = vpop.permute.xlu0 %1707
    %v1710 = vadd.f32 %v1685, %v1708
    %1711 = vset.pattern.permute.xlu0 2
    %1712 = vperm.xlu0 %1711, %v1661
    %v1713 = vpop.permute.xlu0 %1712
    %1715 = vset.pattern.permute.xlu0 2
    %1716 = vperm.xlu0 %1715, %v1662
    %v1717 = vpop.permute.xlu0 %1716
    %v1719 = vmul.f32 %v1657, %v1713
    %v1720 = vmul.f32 %v1658, %v1717
    %vm1721 = vcmask 48160
    %v1722 = vsel %vm1721, %v1719, 0.0
    %v1723 = vsel %vm1721, %v1720, 0.0
    %v1724 = vadd.f32 %v1722, %v1723
    %v1725 = vrot.slane %v1724, 4
    %v1726 = vadd.f32 %v1724, %v1725
    %v1727 = vrot.slane %v1726, 2
    %v1728 = vadd.f32 %v1726, %v1727
    %v1729 = vrot.slane %v1728, 1
    %v1730 = vadd.f32 %v1728, %v1729
    %1732 = vrot.lane.b32.xlu0 %v1730, 124
    %v1733 = vpop.permute.xlu0 %1732
    %v1735 = vadd.f32 %v1710, %v1733
    %1736 = vset.pattern.permute.xlu0 3
    %1737 = vperm.xlu0 %1736, %v1661
    %v1738 = vpop.permute.xlu0 %1737
    %1740 = vset.pattern.permute.xlu0 3
    %1741 = vperm.xlu0 %1740, %v1662
    %v1742 = vpop.permute.xlu0 %1741
    %v1744 = vmul.f32 %v1657, %v1738
    %v1745 = vmul.f32 %v1658, %v1742
    %vm1746 = vcmask 64560
    %v1747 = vsel %vm1746, %v1744, 0.0
    %v1748 = vsel %vm1746, %v1745, 0.0
    %v1749 = vadd.f32 %v1747, %v1748
    %v1750 = vrot.slane %v1749, 4
    %v1751 = vadd.f32 %v1749, %v1750
    %v1752 = vrot.slane %v1751, 2
    %v1753 = vadd.f32 %v1751, %v1752
    %v1754 = vrot.slane %v1753, 1
    %v1755 = vadd.f32 %v1753, %v1754
    %1757 = vrot.lane.b32.xlu0 %v1755, 122
    %v1758 = vpop.permute.xlu0 %1757
    %v1760 = vadd.f32 %v1735, %v1758
    %1761 = vset.pattern.permute.xlu0 4
    %1762 = vperm.xlu0 %1761, %v1661
    %v1763 = vpop.permute.xlu0 %1762
    %1765 = vset.pattern.permute.xlu0 4
    %1766 = vperm.xlu0 %1765, %v1662
    %v1767 = vpop.permute.xlu0 %1766
    %v1769 = vmul.f32 %v1657, %v1763
    %v1770 = vmul.f32 %v1658, %v1767
    %vm1771 = vcmask 80960
    %v1772 = vsel %vm1771, %v1769, 0.0
    %v1773 = vsel %vm1771, %v1770, 0.0
    %v1774 = vadd.f32 %v1772, %v1773
    %v1775 = vrot.slane %v1774, 4
    %v1776 = vadd.f32 %v1774, %v1775
    %v1777 = vrot.slane %v1776, 2
    %v1778 = vadd.f32 %v1776, %v1777
    %v1779 = vrot.slane %v1778, 1
    %v1780 = vadd.f32 %v1778, %v1779
    %1782 = vrot.lane.b32.xlu0 %v1780, 120
    %v1783 = vpop.permute.xlu0 %1782
    %v1785 = vadd.f32 %v1760, %v1783
    %1786 = vset.pattern.permute.xlu0 5
    %1787 = vperm.xlu0 %1786, %v1661
    %v1788 = vpop.permute.xlu0 %1787
    %1790 = vset.pattern.permute.xlu0 5
    %1791 = vperm.xlu0 %1790, %v1662
    %v1792 = vpop.permute.xlu0 %1791
    %v1794 = vmul.f32 %v1657, %v1788
    %v1795 = vmul.f32 %v1658, %v1792
    %vm1796 = vcmask 97360
    %v1797 = vsel %vm1796, %v1794, 0.0
    %v1798 = vsel %vm1796, %v1795, 0.0
    %v1799 = vadd.f32 %v1797, %v1798
    %v1800 = vrot.slane %v1799, 4
    %v1801 = vadd.f32 %v1799, %v1800
    %v1802 = vrot.slane %v1801, 2
    %v1803 = vadd.f32 %v1801, %v1802
    %v1804 = vrot.slane %v1803, 1
    %v1805 = vadd.f32 %v1803, %v1804
    %1807 = vrot.lane.b32.xlu0 %v1805, 118
    %v1808 = vpop.permute.xlu0 %1807
    %v1810 = vadd.f32 %v1785, %v1808
    %1811 = vset.pattern.permute.xlu0 6
    %1812 = vperm.xlu0 %1811, %v1661
    %v1813 = vpop.permute.xlu0 %1812
    %1815 = vset.pattern.permute.xlu0 6
    %1816 = vperm.xlu0 %1815, %v1662
    %v1817 = vpop.permute.xlu0 %1816
    %v1819 = vmul.f32 %v1657, %v1813
    %v1820 = vmul.f32 %v1658, %v1817
    %vm1821 = vcmask 113760
    %v1822 = vsel %vm1821, %v1819, 0.0
    %v1823 = vsel %vm1821, %v1820, 0.0
    %v1824 = vadd.f32 %v1822, %v1823
    %v1825 = vrot.slane %v1824, 4
    %v1826 = vadd.f32 %v1824, %v1825
    %v1827 = vrot.slane %v1826, 2
    %v1828 = vadd.f32 %v1826, %v1827
    %v1829 = vrot.slane %v1828, 1
    %v1830 = vadd.f32 %v1828, %v1829
    %1832 = vrot.lane.b32.xlu0 %v1830, 116
    %v1833 = vpop.permute.xlu0 %1832
    %v1835 = vadd.f32 %v1810, %v1833
    %1836 = vset.pattern.permute.xlu0 7
    %1837 = vperm.xlu0 %1836, %v1661
    %v1838 = vpop.permute.xlu0 %1837
    %1840 = vset.pattern.permute.xlu0 7
    %1841 = vperm.xlu0 %1840, %v1662
    %v1842 = vpop.permute.xlu0 %1841
    %v1844 = vmul.f32 %v1657, %v1838
    %v1845 = vmul.f32 %v1658, %v1842
    %vm1846 = vcmask 130160
    %v1847 = vsel %vm1846, %v1844, 0.0
    %v1848 = vsel %vm1846, %v1845, 0.0
    %v1849 = vadd.f32 %v1847, %v1848
    %v1850 = vrot.slane %v1849, 4
    %v1851 = vadd.f32 %v1849, %v1850
    %v1852 = vrot.slane %v1851, 2
    %v1853 = vadd.f32 %v1851, %v1852
    %v1854 = vrot.slane %v1853, 1
    %v1855 = vadd.f32 %v1853, %v1854
    %1857 = vrot.lane.b32.xlu0 %v1855, 114
    %v1858 = vpop.permute.xlu0 %1857
    %v1860 = vadd.f32 %v1835, %v1858
    %1861 = vset.pattern.permute.xlu0 8
    %1862 = vperm.xlu0 %1861, %v1661
    %v1863 = vpop.permute.xlu0 %1862
    %1865 = vset.pattern.permute.xlu0 8
    %1866 = vperm.xlu0 %1865, %v1662
    %v1867 = vpop.permute.xlu0 %1866
    %v1869 = vmul.f32 %v1657, %v1863
    %v1870 = vmul.f32 %v1658, %v1867
    %vm1871 = vcmask 146560
    %v1872 = vsel %vm1871, %v1869, 0.0
    %v1873 = vsel %vm1871, %v1870, 0.0
    %v1874 = vadd.f32 %v1872, %v1873
    %v1875 = vrot.slane %v1874, 4
    %v1876 = vadd.f32 %v1874, %v1875
    %v1877 = vrot.slane %v1876, 2
    %v1878 = vadd.f32 %v1876, %v1877
    %v1879 = vrot.slane %v1878, 1
    %v1880 = vadd.f32 %v1878, %v1879
    %1882 = vrot.lane.b32.xlu0 %v1880, 112
    %v1883 = vpop.permute.xlu0 %1882
    %v1885 = vadd.f32 %v1860, %v1883
    %1886 = vset.pattern.permute.xlu0 9
    %1887 = vperm.xlu0 %1886, %v1661
    %v1888 = vpop.permute.xlu0 %1887
    %1890 = vset.pattern.permute.xlu0 9
    %1891 = vperm.xlu0 %1890, %v1662
    %v1892 = vpop.permute.xlu0 %1891
    %v1894 = vmul.f32 %v1657, %v1888
    %v1895 = vmul.f32 %v1658, %v1892
    %vm1896 = vcmask 162960
    %v1897 = vsel %vm1896, %v1894, 0.0
    %v1898 = vsel %vm1896, %v1895, 0.0
    %v1899 = vadd.f32 %v1897, %v1898
    %v1900 = vrot.slane %v1899, 4
    %v1901 = vadd.f32 %v1899, %v1900
    %v1902 = vrot.slane %v1901, 2
    %v1903 = vadd.f32 %v1901, %v1902
    %v1904 = vrot.slane %v1903, 1
    %v1905 = vadd.f32 %v1903, %v1904
    %1907 = vrot.lane.b32.xlu0 %v1905, 110
    %v1908 = vpop.permute.xlu0 %1907
    %v1910 = vadd.f32 %v1885, %v1908
    %1911 = vset.pattern.permute.xlu0 10
    %1912 = vperm.xlu0 %1911, %v1661
    %v1913 = vpop.permute.xlu0 %1912
    %1915 = vset.pattern.permute.xlu0 10
    %1916 = vperm.xlu0 %1915, %v1662
    %v1917 = vpop.permute.xlu0 %1916
    %v1919 = vmul.f32 %v1657, %v1913
    %v1920 = vmul.f32 %v1658, %v1917
    %vm1921 = vcmask 179360
    %v1922 = vsel %vm1921, %v1919, 0.0
    %v1923 = vsel %vm1921, %v1920, 0.0
    %v1924 = vadd.f32 %v1922, %v1923
    %v1925 = vrot.slane %v1924, 4
    %v1926 = vadd.f32 %v1924, %v1925
    %v1927 = vrot.slane %v1926, 2
    %v1928 = vadd.f32 %v1926, %v1927
    %v1929 = vrot.slane %v1928, 1
    %v1930 = vadd.f32 %v1928, %v1929
    %1932 = vrot.lane.b32.xlu0 %v1930, 108
    %v1933 = vpop.permute.xlu0 %1932
    %v1935 = vadd.f32 %v1910, %v1933
    %1936 = vset.pattern.permute.xlu0 11
    %1937 = vperm.xlu0 %1936, %v1661
    %v1938 = vpop.permute.xlu0 %1937
    %1940 = vset.pattern.permute.xlu0 11
    %1941 = vperm.xlu0 %1940, %v1662
    %v1942 = vpop.permute.xlu0 %1941
    %v1944 = vmul.f32 %v1657, %v1938
    %v1945 = vmul.f32 %v1658, %v1942
    %vm1946 = vcmask 195760
    %v1947 = vsel %vm1946, %v1944, 0.0
    %v1948 = vsel %vm1946, %v1945, 0.0
    %v1949 = vadd.f32 %v1947, %v1948
    %v1950 = vrot.slane %v1949, 4
    %v1951 = vadd.f32 %v1949, %v1950
    %v1952 = vrot.slane %v1951, 2
    %v1953 = vadd.f32 %v1951, %v1952
    %v1954 = vrot.slane %v1953, 1
    %v1955 = vadd.f32 %v1953, %v1954
    %1957 = vrot.lane.b32.xlu0 %v1955, 106
    %v1958 = vpop.permute.xlu0 %1957
    %v1960 = vadd.f32 %v1935, %v1958
    %1961 = vset.pattern.permute.xlu0 12
    %1962 = vperm.xlu0 %1961, %v1661
    %v1963 = vpop.permute.xlu0 %1962
    %1965 = vset.pattern.permute.xlu0 12
    %1966 = vperm.xlu0 %1965, %v1662
    %v1967 = vpop.permute.xlu0 %1966
    %v1969 = vmul.f32 %v1657, %v1963
    %v1970 = vmul.f32 %v1658, %v1967
    %vm1971 = vcmask 212160
    %v1972 = vsel %vm1971, %v1969, 0.0
    %v1973 = vsel %vm1971, %v1970, 0.0
    %v1974 = vadd.f32 %v1972, %v1973
    %v1975 = vrot.slane %v1974, 4
    %v1976 = vadd.f32 %v1974, %v1975
    %v1977 = vrot.slane %v1976, 2
    %v1978 = vadd.f32 %v1976, %v1977
    %v1979 = vrot.slane %v1978, 1
    %v1980 = vadd.f32 %v1978, %v1979
    %1982 = vrot.lane.b32.xlu0 %v1980, 104
    %v1983 = vpop.permute.xlu0 %1982
    %v1985 = vadd.f32 %v1960, %v1983
    %1986 = vset.pattern.permute.xlu0 13
    %1987 = vperm.xlu0 %1986, %v1661
    %v1988 = vpop.permute.xlu0 %1987
    %1990 = vset.pattern.permute.xlu0 13
    %1991 = vperm.xlu0 %1990, %v1662
    %v1992 = vpop.permute.xlu0 %1991
    %v1994 = vmul.f32 %v1657, %v1988
    %v1995 = vmul.f32 %v1658, %v1992
    %vm1996 = vcmask 228560
    %v1997 = vsel %vm1996, %v1994, 0.0
    %v1998 = vsel %vm1996, %v1995, 0.0
    %v1999 = vadd.f32 %v1997, %v1998
    %v2000 = vrot.slane %v1999, 4
    %v2001 = vadd.f32 %v1999, %v2000
    %v2002 = vrot.slane %v2001, 2
    %v2003 = vadd.f32 %v2001, %v2002
    %v2004 = vrot.slane %v2003, 1
    %v2005 = vadd.f32 %v2003, %v2004
    %2007 = vrot.lane.b32.xlu0 %v2005, 102
    %v2008 = vpop.permute.xlu0 %2007
    %v2010 = vadd.f32 %v1985, %v2008
    %2011 = vset.pattern.permute.xlu0 14
    %2012 = vperm.xlu0 %2011, %v1661
    %v2013 = vpop.permute.xlu0 %2012
    %2015 = vset.pattern.permute.xlu0 14
    %2016 = vperm.xlu0 %2015, %v1662
    %v2017 = vpop.permute.xlu0 %2016
    %v2019 = vmul.f32 %v1657, %v2013
    %v2020 = vmul.f32 %v1658, %v2017
    %vm2021 = vcmask 244960
    %v2022 = vsel %vm2021, %v2019, 0.0
    %v2023 = vsel %vm2021, %v2020, 0.0
    %v2024 = vadd.f32 %v2022, %v2023
    %v2025 = vrot.slane %v2024, 4
    %v2026 = vadd.f32 %v2024, %v2025
    %v2027 = vrot.slane %v2026, 2
    %v2028 = vadd.f32 %v2026, %v2027
    %v2029 = vrot.slane %v2028, 1
    %v2030 = vadd.f32 %v2028, %v2029
    %2032 = vrot.lane.b32.xlu0 %v2030, 100
    %v2033 = vpop.permute.xlu0 %2032
    %v2035 = vadd.f32 %v2010, %v2033
    %2036 = vset.pattern.permute.xlu0 15
    %2037 = vperm.xlu0 %2036, %v1661
    %v2038 = vpop.permute.xlu0 %2037
    %2040 = vset.pattern.permute.xlu0 15
    %2041 = vperm.xlu0 %2040, %v1662
    %v2042 = vpop.permute.xlu0 %2041
    %v2044 = vmul.f32 %v1657, %v2038
    %v2045 = vmul.f32 %v1658, %v2042
    %vm2046 = vcmask 261360
    %v2047 = vsel %vm2046, %v2044, 0.0
    %v2048 = vsel %vm2046, %v2045, 0.0
    %v2049 = vadd.f32 %v2047, %v2048
    %v2050 = vrot.slane %v2049, 4
    %v2051 = vadd.f32 %v2049, %v2050
    %v2052 = vrot.slane %v2051, 2
    %v2053 = vadd.f32 %v2051, %v2052
    %v2054 = vrot.slane %v2053, 1
    %v2055 = vadd.f32 %v2053, %v2054
    %2057 = vrot.lane.b32.xlu0 %v2055, 98
    %v2058 = vpop.permute.xlu0 %2057
    %v2060 = vadd.f32 %v2035, %v2058
    %vm2061 = vcmp.gt.f32.partialorder %v2060, 0.0
    %v2062 = vmul.f32 %v2060, 0.2
    %v2063 = vsel %vm2061, %v2060, %v2062
    %vm2064 = vcmask 8192
    %2065 = vst.msk [vmem:[#allocation3] sm:$0x1] %vm2064, %v2063
    // Predicated region
    $region26: #{dcgan_discriminator_forward.1} parent=1 // pred_check
      _
    $region27: #{dcgan_discriminator_forward.1} parent=1 // pred_check_branch
      %2067 = sbr.rel (0) target = $region29
    $region28: #{dcgan_discriminator_forward.1} parent=1 // pred_region
      %s2069 = ssub.s32 16, 16
      %2070 = vsyncadd [#allocation4], %s2069
      %s2072 = sshll.u32 [#allocation3], 4
      %s2073 = int_to_ptr.vmem [resolvable:$true] %s2072
      %2075 = dma.vmem_to_hbm [thread:$0]  %s2073, 16, %s6, [#allocation4]
    $region29: #{dcgan_discriminator_forward.1} parent=1 // pred_fallthru
      _
    // Predicated region
    $region30: #{dcgan_discriminator_forward.1} parent=1 // pred_check
      _
    $region31: #{dcgan_discriminator_forward.1} parent=1 // pred_check_branch
      %2077 = sbr.rel (0) target = $region33
    $region32: #{dcgan_discriminator_forward.1} parent=1 // pred_region
      %s2079 = ssub.s32 256, 256
      %2080 = vsyncadd [#allocation6], %s2079
      %s2081 = sshll.u32 [#allocation5], 4
      %s2082 = int_to_ptr.vmem [resolvable:$true] %s2081
      %2087 = dma.vmem_to_hbm [thread:$0]  %s2082, 256, %s7, [#allocation6], 128, 128, 8
    $region33: #{dcgan_discriminator_forward.1} parent=1 // pred_fallthru
      _
    // Predicated region
    $region34: #{dcgan_discriminator_forward.1} parent=1 // pred_check
      _
    $region35: #{dcgan_discriminator_forward.1} parent=1 // pred_check_branch
      %2089 = sbr.rel (0) target = $region37
    $region36: #{dcgan_discriminator_forward.1} parent=1 // pred_region
      %2090 = dma.done [#allocation4], 16
    $region37: #{dcgan_discriminator_forward.1} parent=1 // pred_fallthru
      _
    // Predicated region
    $region38: #{dcgan_discriminator_forward.1} parent=1 // pred_check
      _
    $region39: #{dcgan_discriminator_forward.1} parent=1 // pred_check_branch
      %2092 = sbr.rel (0) target = $region41
    $region40: #{dcgan_discriminator_forward.1} parent=1 // pred_region
      %2093 = dma.done [#allocation6], 256
    $region41: #{dcgan_discriminator_forward.1} parent=1 // pred_fallthru
      _
    %2094 = vsyncpa [#allocation4], 1
    %2095 = vsyncpa [#allocation6], 1

</llo_original>
